<compile_context>
chip_gen: v7x
topology: tpu7x:2x2x1
jax: 0.10.0
libtpu: 0.0.40
codegen_flags: <defaults>
</compile_context>

<pallas_src>
import numpy as np
import jax
import jax.numpy as jnp
from jax import lax
from jax.experimental import pallas as pl
from jax.experimental.pallas import tpu as pltpu

DIM = 128      # residual-stream width (hard-coded in the PyTorch module)
ADIM = 64      # attention head width


# ------------------------------ fused kernel ------------------------------

def _cross_attention_kernel(x_ref, kv_ref,
                            wq_ref, bq_ref, wkv_ref, bkv_ref,
                            wo_ref, bo_ref, w1_ref, b1_ref, w2_ref, b2_ref,
                            o_ref, kvp_ref):
    """One (batch, query-tile) grid step of the whole CrossAttentionBlock.

    Channel-major activations: (channels, tokens), tokens on lanes.  Weights are kept in the
    PyTorch (out_features, in_features) layout so y^T = W @ x^T needs no transposes anywhere.
    """
    f32, bf16 = jnp.float32, jnp.bfloat16

    # --- stacked K/V projection: computed once per batch element, reused across query tiles ---
    @pl.when(pl.program_id(1) == 0)
    def _():
        kv = kv_ref[0]                                                          # (128, Skv) bf16
        kvp = jnp.dot(wkv_ref[...], kv, preferred_element_type=f32) + bkv_ref[...]
        kvp_ref[...] = kvp.astype(bf16)                                         # (128, Skv)

    x = x_ref[0]                                                                # (128, TQ) f32
    x_bf = x.astype(bf16)

    # --- Q projection (1/sqrt(64) already folded into Wq/bq by the wrapper) ---
    qT = jnp.dot(wq_ref[...], x_bf, preferred_element_type=f32) + bq_ref[...]   # (64, TQ)
    qT = qT.astype(bf16)

    kT = kvp_ref[pl.ds(0, ADIM), :]                                             # (64, Skv) bf16
    vT = kvp_ref[pl.ds(ADIM, ADIM), :]                                          # (64, Skv) bf16

    # --- attention: scores, unnormalized softmax, PV, deferred normalization ---
    s = lax.dot_general(qT, kT, (((0,), (0,)), ((), ())),
                        preferred_element_type=f32)                             # (TQ, Skv)
    m = jnp.max(s, axis=-1, keepdims=True)
    p = jnp.exp(s - m).astype(bf16)                                             # unnormalized probs
    attnT = lax.dot_general(vT, p, (((1,), (1,)), ((), ())),
                            preferred_element_type=f32)                         # (64, TQ)
    ones_row = jnp.ones((1, p.shape[-1]), dtype=bf16)
    lT = lax.dot_general(ones_row, p, (((1,), (1,)), ((), ())),
                         preferred_element_type=f32)                            # (1, TQ) row sums
    attnT = attnT * pl.reciprocal(lT, approx=True)                              # normalize on EUP

    # --- output projection + residual (residual kept f32) ---
    out = (jnp.dot(wo_ref[...], attnT.astype(bf16), preferred_element_type=f32)
           + bo_ref[...] + x)                                                   # (128, TQ) f32

    # --- 2-layer MLP + residual ---
    h = jnp.maximum(jnp.dot(w1_ref[...], out.astype(bf16), preferred_element_type=f32)
                    + b1_ref[...], 0.0)
    out2 = jnp.dot(w2_ref[...], h.astype(bf16), preferred_element_type=f32) + b2_ref[...]
    o_ref[0] = (out + out2).astype(o_ref.dtype)


# ------------------------------ wrapper ------------------------------

def _pick_query_tile(s_q):
    """Largest lane-aligned query tile that divides S_q; else fall back to padding to 128s."""
    for t in (512, 256, 128):
        if s_q % t == 0:
            return t, s_q
    # TODO(synk): handle the ragged tail with an in-kernel masked store instead of pad + slice.
    t = 128
    return t, ((s_q + t - 1) // t) * t


def _vmem_limit_bytes():
    try:
        cap = int(pltpu.get_tpu_info().vmem_capacity_bytes)
    except Exception:
        return 48 * 1024 * 1024
    # ~25% headroom for the compiler; never request more than 96 MiB (v5e/v6e -> 96, v7x -> 48).
    return int(min(96 * 1024 * 1024, (cap * 3) // 4))


_VMEM_LIMIT_BYTES = _vmem_limit_bytes()


def cross_attention_block(params, ft_A, ft_B):
    """ft_A, ft_B: (B, 128, *spatial) float arrays (NCHW / NCDHW).  Returns ft_A.shape."""
    B, C = ft_A.shape[0], ft_A.shape[1]
    assert C == DIM and ft_B.shape[0] == B and ft_B.shape[1] == DIM, (ft_A.shape, ft_B.shape)
    s_q = int(np.prod(ft_A.shape[2:]))
    s_kv = int(np.prod(ft_B.shape[2:]))

    a = ft_A.reshape(B, DIM, s_q).astype(jnp.float32)        # query tokens + residual (f32)
    kv = ft_B.reshape(B, DIM, s_kv).astype(jnp.bfloat16)     # K/V tokens (matmul-only -> bf16)

    tq, s_pad = _pick_query_tile(s_q)
    if s_pad != s_q:
        a = jnp.pad(a, ((0, 0), (0, 0), (0, s_pad - s_q)))
    n_q_tiles = s_pad // tq

    scale = 1.0 / float(np.sqrt(ADIM))
    bf16 = jnp.bfloat16
    col = lambda v: v.reshape(-1, 1).astype(jnp.float32)     # biases stay f32 (added post-accum)
    wq = (params["wq"] * scale).astype(bf16)                 # fold attention scale into Wq/bq
    bq = col(params["bq"] * scale)
    wkv = jnp.concatenate([params["wk"], params["wv"]], axis=0).astype(bf16)     # (128, 128)
    bkv = jnp.concatenate([col(params["bk"]), col(params["bv"])], axis=0)        # (128, 1)
    wo, bo = params["wo"].astype(bf16), col(params["bo"])
    w1, b1 = params["w1"].astype(bf16), col(params["b1"])
    w2, b2 = params["w2"].astype(bf16), col(params["b2"])

    w_map = lambda b, q: (0, 0)                               # weights resident in VMEM

    out_padded = pl.pallas_call(
        _cross_attention_kernel,
        out_shape=jax.ShapeDtypeStruct((B, DIM, s_pad), jnp.float32),
        grid=(B, n_q_tiles),
        in_specs=[
            pl.BlockSpec((1, DIM, tq), lambda b, q: (b, 0, q)),     # query tokens (streamed)
            pl.BlockSpec((1, DIM, s_kv), lambda b, q: (b, 0, 0)),   # K/V tokens (1 DMA per batch)
            pl.BlockSpec((ADIM, DIM), w_map), pl.BlockSpec((ADIM, 1), w_map),          # Wq, bq
            pl.BlockSpec((2 * ADIM, DIM), w_map), pl.BlockSpec((2 * ADIM, 1), w_map),  # Wkv, bkv
            pl.BlockSpec((DIM, ADIM), w_map), pl.BlockSpec((DIM, 1), w_map),           # Wo, bo
            pl.BlockSpec((DIM, DIM), w_map), pl.BlockSpec((DIM, 1), w_map),            # W1, b1
            pl.BlockSpec((DIM, DIM), w_map), pl.BlockSpec((DIM, 1), w_map),            # W2, b2
        ],
        out_specs=pl.BlockSpec((1, DIM, tq), lambda b, q: (b, 0, q)),
        scratch_shapes=[pltpu.VMEM((2 * ADIM, s_kv), jnp.bfloat16)],   # projected K/V per batch
        compiler_params=pltpu.CompilerParams(
            dimension_semantics=("parallel", "arbitrary"),
            vmem_limit_bytes=_VMEM_LIMIT_BYTES,
        ),
    )(a, kv, wq, bq, wkv, bkv, wo, bo, w1, b1, w2, b2)

    out = out_padded[:, :, :s_q] if s_pad != s_q else out_padded
    return out.reshape(ft_A.shape)


# ------------------------------ params & reference ------------------------------

def init_params(key):
    """PyTorch nn.Linear default init; weights kept in PyTorch (out, in) layout, all f32."""
    def linear(k, out_f, in_f):
        kw, kb = jax.random.split(k)
        bound = 1.0 / float(np.sqrt(in_f))
        w = jax.random.uniform(kw, (out_f, in_f), jnp.float32, -bound, bound)
        b = jax.random.uniform(kb, (out_f,), jnp.float32, -bound, bound)
        return w, b
    ks = jax.random.split(key, 6)
    wq, bq = linear(ks[0], ADIM, DIM)
    wk, bk = linear(ks[1], ADIM, DIM)
    wv, bv = linear(ks[2], ADIM, DIM)
    wo, bo = linear(ks[3], DIM, ADIM)
    w1, b1 = linear(ks[4], DIM, DIM)
    w2, b2 = linear(ks[5], DIM, DIM)
    return dict(wq=wq, bq=bq, wk=wk, bk=bk, wv=wv, bv=bv,
                wo=wo, bo=bo, w1=w1, b1=b1, w2=w2, b2=b2)


def reference_forward(params, ft_A, ft_B):
    """Pure-JAX f32 mirror of the PyTorch forward (dimension=2/3 handled by flattening)."""
    B = ft_A.shape[0]
    s_q = int(np.prod(ft_A.shape[2:]))
    s_kv = int(np.prod(ft_B.shape[2:]))
    q_tok = jnp.transpose(ft_A.reshape(B, DIM, s_q), (0, 2, 1))    # (B, Sq, 128)
    kv_tok = jnp.transpose(ft_B.reshape(B, DIM, s_kv), (0, 2, 1))  # (B, Skv, 128)
    lin = lambda x, w, b: x @ w.T + b
    q = lin(q_tok, params["wq"], params["bq"])
    k = lin(kv_tok, params["wk"], params["bk"])
    v = lin(kv_tok, params["wv"], params["bv"])
    s = jnp.einsum("bqd,bkd->bqk", q, k) / np.sqrt(ADIM)
    p = jax.nn.softmax(s, axis=-1)
    attn = jnp.einsum("bqk,bkd->bqd", p, v)
    out = lin(attn, params["wo"], params["bo"]) + q_tok
    out = out + lin(jax.nn.relu(lin(out, params["w1"], params["b1"])), params["w2"], params["b2"])
    return jnp.transpose(out, (0, 2, 1)).reshape(ft_A.shape)


# ------------------------------ main ------------------------------

if __name__ == "__main__":
    key = jax.random.PRNGKey(0)
    kp, ka, kb = jax.random.split(key, 3)
    params = init_params(kp)
    ft_A = jax.random.normal(ka, (2, 128, 16, 16), jnp.float32)   # queries: S_q = 256
    ft_B = jax.random.normal(kb, (2, 128, 8, 16), jnp.float32)    # keys/values: S_kv = 128

    fwd = jax.jit(cross_attention_block)
    out = jax.block_until_ready(fwd(params, ft_A, ft_B))

    assert out.shape == ft_A.shape, out.shape
    assert bool(jnp.all(jnp.isfinite(out)))

    ref = reference_forward(params, ft_A, ft_B)
    max_err = float(jnp.max(jnp.abs(out - ref)))
    assert jnp.allclose(out, ref, atol=2e-2, rtol=2e-2), f"max abs err = {max_err}"

    print("KERNEL_OK")
</pallas_src>

<mosaic_0001>
module attributes {stable_mosaic.version = 11 : i64} {
  func.func @_cross_attention_kernel(%arg0: i32, %arg1: i32, %arg2: memref<1x128x256xf32, #tpu.memory_space<vmem>>, %arg3: memref<1x128x128xbf16, #tpu.memory_space<vmem>>, %arg4: memref<64x128xbf16, #tpu.memory_space<vmem>>, %arg5: memref<64x1xf32, #tpu.memory_space<vmem>>, %arg6: memref<128x128xbf16, #tpu.memory_space<vmem>>, %arg7: memref<128x1xf32, #tpu.memory_space<vmem>>, %arg8: memref<128x64xbf16, #tpu.memory_space<vmem>>, %arg9: memref<128x1xf32, #tpu.memory_space<vmem>>, %arg10: memref<128x128xbf16, #tpu.memory_space<vmem>>, %arg11: memref<128x1xf32, #tpu.memory_space<vmem>>, %arg12: memref<128x128xbf16, #tpu.memory_space<vmem>>, %arg13: memref<128x1xf32, #tpu.memory_space<vmem>>, %arg14: memref<1x128x256xf32, #tpu.memory_space<vmem>>, %arg15: memref<128x128xbf16, #tpu.memory_space<vmem>>) attributes {dimension_semantics = [#tpu.dimension_semantics<parallel>, #tpu.dimension_semantics<arbitrary>], iteration_bounds = array<i64: 2, 1>, scalar_prefetch = 0 : i64, scratch_operands = 1 : i64, tpu.core_type = #tpu.core_type<tc>, window_params = [{transform_indices = @transform_0, window_bounds = array<i64: 1, 128, 256>}, {transform_indices = @transform_1, window_bounds = array<i64: 1, 128, 128>}, {pipeline_mode = #tpu.pipeline_mode<synchronous>, transform_indices = @transform_2, window_bounds = array<i64: 64, 128>}, {pipeline_mode = #tpu.pipeline_mode<synchronous>, transform_indices = @transform_3, window_bounds = array<i64: 64, 1>}, {pipeline_mode = #tpu.pipeline_mode<synchronous>, transform_indices = @transform_4, window_bounds = array<i64: 128, 128>}, {pipeline_mode = #tpu.pipeline_mode<synchronous>, transform_indices = @transform_5, window_bounds = array<i64: 128, 1>}, {pipeline_mode = #tpu.pipeline_mode<synchronous>, transform_indices = @transform_6, window_bounds = array<i64: 128, 64>}, {pipeline_mode = #tpu.pipeline_mode<synchronous>, transform_indices = @transform_7, window_bounds = array<i64: 128, 1>}, {pipeline_mode = #tpu.pipeline_mode<synchronous>, transform_indices = @transform_8, window_bounds = array<i64: 128, 128>}, {pipeline_mode = #tpu.pipeline_mode<synchronous>, transform_indices = @transform_9, window_bounds = array<i64: 128, 1>}, {pipeline_mode = #tpu.pipeline_mode<synchronous>, transform_indices = @transform_10, window_bounds = array<i64: 128, 128>}, {pipeline_mode = #tpu.pipeline_mode<synchronous>, transform_indices = @transform_11, window_bounds = array<i64: 128, 1>}, {transform_indices = @transform_12, window_bounds = array<i64: 1, 128, 256>}]} {
    %c0_i32 = arith.constant 0 : i32
    %0 = arith.cmpi eq, %arg1, %c0_i32 : i32
    %1 = arith.extui %0 : i1 to i32
    %c0_i32_0 = arith.constant 0 : i32
    %2 = arith.cmpi ne, %1, %c0_i32_0 : i32
    scf.if %2 {
      %c0_34 = arith.constant 0 : index
      %c0_35 = arith.constant 0 : index
      %c0_36 = arith.constant 0 : index
      %52 = vector.load %arg3[%c0_34, %c0_35, %c0_36] : memref<1x128x128xbf16, #tpu.memory_space<vmem>>, vector<1x128x128xbf16>
      %53 = vector.shape_cast %52 : vector<1x128x128xbf16> to vector<128x128xbf16>
      %c0_37 = arith.constant 0 : index
      %c0_38 = arith.constant 0 : index
      %54 = vector.load %arg6[%c0_37, %c0_38] : memref<128x128xbf16, #tpu.memory_space<vmem>>, vector<128x128xbf16>
      %cst_39 = arith.constant dense<0.000000e+00> : vector<128x128xf32>
      %55 = tpu.matmul %54, %53, %cst_39 {dimension_numbers = #tpu.dot_dimension_numbers<[1], [0], [0], [1], [0, 0, 1, 1], [], []>} : vector<128x128xbf16>, vector<128x128xbf16>, vector<128x128xf32> -> vector<128x128xf32>
      %c0_40 = arith.constant 0 : index
      %c0_41 = arith.constant 0 : index
      %56 = vector.load %arg7[%c0_40, %c0_41] : memref<128x1xf32, #tpu.memory_space<vmem>>, vector<128x1xf32>
      %57 = vector.broadcast %56 : vector<128x1xf32> to vector<128x128xf32>
      %58 = arith.addf %55, %57 : vector<128x128xf32>
      %59 = arith.truncf %58 : vector<128x128xf32> to vector<128x128xbf16>
      %c0_42 = arith.constant 0 : index
      %c0_43 = arith.constant 0 : index
      %60 = vector.load %arg15[%c0_42, %c0_43] : memref<128x128xbf16, #tpu.memory_space<vmem>>, vector<128x128xbf16>
      tpu.vector_store %arg15[%c0_42, %c0_43], %59 {strides = array<i32>} : memref<128x128xbf16, #tpu.memory_space<vmem>>, vector<128x128xbf16>,
    } else {
    }
    %c0 = arith.constant 0 : index
    %c0_1 = arith.constant 0 : index
    %c0_2 = arith.constant 0 : index
    %3 = vector.load %arg2[%c0, %c0_1, %c0_2] : memref<1x128x256xf32, #tpu.memory_space<vmem>>, vector<1x128x256xf32>
    %4 = vector.shape_cast %3 : vector<1x128x256xf32> to vector<128x256xf32>
    %5 = arith.truncf %4 : vector<128x256xf32> to vector<128x256xbf16>
    %c0_3 = arith.constant 0 : index
    %c0_4 = arith.constant 0 : index
    %6 = vector.load %arg4[%c0_3, %c0_4] : memref<64x128xbf16, #tpu.memory_space<vmem>>, vector<64x128xbf16>
    %cst = arith.constant dense<0.000000e+00> : vector<64x256xf32>
    %7 = tpu.matmul %6, %5, %cst {dimension_numbers = #tpu.dot_dimension_numbers<[1], [0], [0], [1], [0, 0, 1, 1], [], []>} : vector<64x128xbf16>, vector<128x256xbf16>, vector<64x256xf32> -> vector<64x256xf32>
    %c0_5 = arith.constant 0 : index
    %c0_6 = arith.constant 0 : index
    %8 = vector.load %arg5[%c0_5, %c0_6] : memref<64x1xf32, #tpu.memory_space<vmem>>, vector<64x1xf32>
    %9 = vector.broadcast %8 : vector<64x1xf32> to vector<64x256xf32>
    %10 = arith.addf %7, %9 : vector<64x256xf32>
    %11 = arith.truncf %10 : vector<64x256xf32> to vector<64x256xbf16>
    %c0_7 = arith.constant 0 : index
    %c0_8 = arith.constant 0 : index
    %12 = vector.load %arg15[%c0_7, %c0_8] : memref<128x128xbf16, #tpu.memory_space<vmem>>, vector<64x128xbf16>
    %c64 = arith.constant 64 : index
    %c0_9 = arith.constant 0 : index
    %13 = vector.load %arg15[%c64, %c0_9] : memref<128x128xbf16, #tpu.memory_space<vmem>>, vector<64x128xbf16>
    %cst_10 = arith.constant dense<0.000000e+00> : vector<256x128xf32>
    %14 = tpu.matmul %11, %12, %cst_10 {dimension_numbers = #tpu.dot_dimension_numbers<[0], [0], [1], [1], [0, 1, 1, 1], [], []>} : vector<64x256xbf16>, vector<64x128xbf16>, vector<256x128xf32> -> vector<256x128xf32>
    %cst_11 = arith.constant dense<0xFF800000> : vector<256xf32>
    %15 = vector.multi_reduction <maximumf>, %14, %cst_11 [1] : vector<256x128xf32> to vector<256xf32>
    %16 = vector.shape_cast %15 : vector<256xf32> to vector<256x1xf32>
    %17 = vector.broadcast %16 : vector<256x1xf32> to vector<256x128xf32>
    %18 = arith.subf %14, %17 : vector<256x128xf32>
    %19 = math.exp %18 : vector<256x128xf32>
    %20 = arith.truncf %19 : vector<256x128xf32> to vector<256x128xbf16>
    %cst_12 = arith.constant dense<0.000000e+00> : vector<64x256xf32>
    %21 = tpu.matmul %13, %20, %cst_12 {dimension_numbers = #tpu.dot_dimension_numbers<[1], [1], [0], [0], [0, 0, 1, 0], [], []>} : vector<64x128xbf16>, vector<256x128xbf16>, vector<64x256xf32> -> vector<64x256xf32>
    %cst_13 = arith.constant 1.000000e+00 : bf16
    %22 = vector.broadcast %cst_13 : bf16 to vector<1x128xbf16>
    %cst_14 = arith.constant dense<0.000000e+00> : vector<1x256xf32>
    %23 = tpu.matmul %22, %20, %cst_14 {dimension_numbers = #tpu.dot_dimension_numbers<[1], [1], [0], [0], [0, 0, 1, 0], [], []>} : vector<1x128xbf16>, vector<256x128xbf16>, vector<1x256xf32> -> vector<1x256xf32>
    %24 = tpu.reciprocal %23 {approx = true} : vector<1x256xf32> -> vector<1x256xf32>
    %25 = vector.broadcast %24 : vector<1x256xf32> to vector<64x256xf32>
    %26 = arith.mulf %21, %25 : vector<64x256xf32>
    %c0_15 = arith.constant 0 : index
    %c0_16 = arith.constant 0 : index
    %27 = vector.load %arg8[%c0_15, %c0_16] : memref<128x64xbf16, #tpu.memory_space<vmem>>, vector<128x64xbf16>
    %28 = arith.truncf %26 : vector<64x256xf32> to vector<64x256xbf16>
    %cst_17 = arith.constant dense<0.000000e+00> : vector<128x256xf32>
    %29 = tpu.matmul %27, %28, %cst_17 {dimension_numbers = #tpu.dot_dimension_numbers<[1], [0], [0], [1], [0, 0, 1, 1], [], []>} : vector<128x64xbf16>, vector<64x256xbf16>, vector<128x256xf32> -> vector<128x256xf32>
    %c0_18 = arith.constant 0 : index
    %c0_19 = arith.constant 0 : index
    %30 = vector.load %arg9[%c0_18, %c0_19] : memref<128x1xf32, #tpu.memory_space<vmem>>, vector<128x1xf32>
    %31 = vector.broadcast %30 : vector<128x1xf32> to vector<128x256xf32>
    %32 = arith.addf %29, %31 : vector<128x256xf32>
    %33 = arith.addf %32, %4 : vector<128x256xf32>
    %c0_20 = arith.constant 0 : index
    %c0_21 = arith.constant 0 : index
    %34 = vector.load %arg10[%c0_20, %c0_21] : memref<128x128xbf16, #tpu.memory_space<vmem>>, vector<128x128xbf16>
    %35 = arith.truncf %33 : vector<128x256xf32> to vector<128x256xbf16>
    %cst_22 = arith.constant dense<0.000000e+00> : vector<128x256xf32>
    %36 = tpu.matmul %34, %35, %cst_22 {dimension_numbers = #tpu.dot_dimension_numbers<[1], [0], [0], [1], [0, 0, 1, 1], [], []>} : vector<128x128xbf16>, vector<128x256xbf16>, vector<128x256xf32> -> vector<128x256xf32>
    %c0_23 = arith.constant 0 : index
    %c0_24 = arith.constant 0 : index
    %37 = vector.load %arg11[%c0_23, %c0_24] : memref<128x1xf32, #tpu.memory_space<vmem>>, vector<128x1xf32>
    %38 = vector.broadcast %37 : vector<128x1xf32> to vector<128x256xf32>
    %39 = arith.addf %36, %38 : vector<128x256xf32>
    %cst_25 = arith.constant 0.000000e+00 : f32
    %40 = vector.broadcast %cst_25 : f32 to vector<128x256xf32>
    %41 = arith.maximumf %39, %40 : vector<128x256xf32>
    %c0_26 = arith.constant 0 : index
    %c0_27 = arith.constant 0 : index
    %42 = vector.load %arg12[%c0_26, %c0_27] : memref<128x128xbf16, #tpu.memory_space<vmem>>, vector<128x128xbf16>
    %43 = arith.truncf %41 : vector<128x256xf32> to vector<128x256xbf16>
    %cst_28 = arith.constant dense<0.000000e+00> : vector<128x256xf32>
    %44 = tpu.matmul %42, %43, %cst_28 {dimension_numbers = #tpu.dot_dimension_numbers<[1], [0], [0], [1], [0, 0, 1, 1], [], []>} : vector<128x128xbf16>, vector<128x256xbf16>, vector<128x256xf32> -> vector<128x256xf32>
    %c0_29 = arith.constant 0 : index
    %c0_30 = arith.constant 0 : index
    %45 = vector.load %arg13[%c0_29, %c0_30] : memref<128x1xf32, #tpu.memory_space<vmem>>, vector<128x1xf32>
    %46 = vector.broadcast %45 : vector<128x1xf32> to vector<128x256xf32>
    %47 = arith.addf %44, %46 : vector<128x256xf32>
    %48 = arith.addf %33, %47 : vector<128x256xf32>
    %c0_31 = arith.constant 0 : index
    %c0_32 = arith.constant 0 : index
    %c0_33 = arith.constant 0 : index
    %49 = vector.load %arg14[%c0_31, %c0_32, %c0_33] : memref<1x128x256xf32, #tpu.memory_space<vmem>>, vector<1x128x256xf32>
    %50 = vector.shape_cast %49 : vector<1x128x256xf32> to vector<128x256xf32>
    %51 = vector.shape_cast %48 : vector<128x256xf32> to vector<1x128x256xf32>
    tpu.vector_store %arg14[%c0_31, %c0_32, %c0_33], %51 {strides = array<i32>} : memref<1x128x256xf32, #tpu.memory_space<vmem>>, vector<1x128x256xf32>,
    return
  }
  func.func @transform_0(%arg0: i32, %arg1: i32) -> (i32, i32, i32) {
    %c0_i32 = arith.constant 0 : i32
    %c0_i32_0 = arith.constant 0 : i32
    return %arg0, %c0_i32, %arg1 : i32, i32, i32
  }
  func.func @transform_1(%arg0: i32, %arg1: i32) -> (i32, i32, i32) {
    %c0_i32 = arith.constant 0 : i32
    %c0_i32_0 = arith.constant 0 : i32
    %c0_i32_1 = arith.constant 0 : i32
    return %arg0, %c0_i32, %c0_i32_0 : i32, i32, i32
  }
  func.func @transform_2(%arg0: i32, %arg1: i32) -> (i32, i32) {
    %c0_i32 = arith.constant 0 : i32
    %c0_i32_0 = arith.constant 0 : i32
    %c0_i32_1 = arith.constant 0 : i32
    return %c0_i32, %c0_i32_0 : i32, i32
  }
  func.func @transform_3(%arg0: i32, %arg1: i32) -> (i32, i32) {
    %c0_i32 = arith.constant 0 : i32
    %c0_i32_0 = arith.constant 0 : i32
    %c0_i32_1 = arith.constant 0 : i32
    return %c0_i32, %c0_i32_0 : i32, i32
  }
  func.func @transform_4(%arg0: i32, %arg1: i32) -> (i32, i32) {
    %c0_i32 = arith.constant 0 : i32
    %c0_i32_0 = arith.constant 0 : i32
    %c0_i32_1 = arith.constant 0 : i32
    return %c0_i32, %c0_i32_0 : i32, i32
  }
  func.func @transform_5(%arg0: i32, %arg1: i32) -> (i32, i32) {
    %c0_i32 = arith.constant 0 : i32
    %c0_i32_0 = arith.constant 0 : i32
    %c0_i32_1 = arith.constant 0 : i32
    return %c0_i32, %c0_i32_0 : i32, i32
  }
  func.func @transform_6(%arg0: i32, %arg1: i32) -> (i32, i32) {
    %c0_i32 = arith.constant 0 : i32
    %c0_i32_0 = arith.constant 0 : i32
    %c0_i32_1 = arith.constant 0 : i32
    return %c0_i32, %c0_i32_0 : i32, i32
  }
  func.func @transform_7(%arg0: i32, %arg1: i32) -> (i32, i32) {
    %c0_i32 = arith.constant 0 : i32
    %c0_i32_0 = arith.constant 0 : i32
    %c0_i32_1 = arith.constant 0 : i32
    return %c0_i32, %c0_i32_0 : i32, i32
  }
  func.func @transform_8(%arg0: i32, %arg1: i32) -> (i32, i32) {
    %c0_i32 = arith.constant 0 : i32
    %c0_i32_0 = arith.constant 0 : i32
    %c0_i32_1 = arith.constant 0 : i32
    return %c0_i32, %c0_i32_0 : i32, i32
  }
  func.func @transform_9(%arg0: i32, %arg1: i32) -> (i32, i32) {
    %c0_i32 = arith.constant 0 : i32
    %c0_i32_0 = arith.constant 0 : i32
    %c0_i32_1 = arith.constant 0 : i32
    return %c0_i32, %c0_i32_0 : i32, i32
  }
  func.func @transform_10(%arg0: i32, %arg1: i32) -> (i32, i32) {
    %c0_i32 = arith.constant 0 : i32
    %c0_i32_0 = arith.constant 0 : i32
    %c0_i32_1 = arith.constant 0 : i32
    return %c0_i32, %c0_i32_0 : i32, i32
  }
  func.func @transform_11(%arg0: i32, %arg1: i32) -> (i32, i32) {
    %c0_i32 = arith.constant 0 : i32
    %c0_i32_0 = arith.constant 0 : i32
    %c0_i32_1 = arith.constant 0 : i32
    return %c0_i32, %c0_i32_0 : i32, i32
  }
  func.func @transform_12(%arg0: i32, %arg1: i32) -> (i32, i32, i32) {
    %c0_i32 = arith.constant 0 : i32
    %c0_i32_0 = arith.constant 0 : i32
    return %arg0, %c0_i32, %arg1 : i32, i32, i32
  }
}

</mosaic_0001>

<llo_original>
// kernel: cross_attention_block.1
$region0: #{cross_attention_block.1}
  #allocation0 [shape = 'u32[]', space=smem, size = 0x4, offset = 0x4, fixed_abs, tag = 'smem constant byte address 0x4 - core index']
  #allocation1 [shape = 'u32[144,128]{1,0:T(1,128)}', space=vmem, size = 0x12000, scoped, tag = 'internal scratch']
  #allocation2 [shape = 'bf16[128,128]{1,0:T(16,128)(2,1)}', space=vmem, size = 0x8000, scoped, tag = 'scratch operand']
  %s0 = inlined_call_operand.vmem [shape: f32[2,128,256], index: 0, kind: input, shape index: {}]
  %s1 = inlined_call_operand.vmem [shape: bf16[2,128,128], index: 1, kind: input, shape index: {}]
  %s2 = inlined_call_operand.vmem [shape: bf16[64,128], index: 2, kind: input, shape index: {}]
  %s3 = inlined_call_operand.vmem [shape: f32[64,1], index: 3, kind: input, shape index: {}]
  %s4 = inlined_call_operand.vmem [shape: bf16[128,128], index: 4, kind: input, shape index: {}]
  %s5 = inlined_call_operand.vmem [shape: f32[128,1], index: 5, kind: input, shape index: {}]
  %s6 = inlined_call_operand.vmem [shape: bf16[128,64], index: 6, kind: input, shape index: {}]
  %s7 = inlined_call_operand.vmem [shape: f32[128,1], index: 7, kind: input, shape index: {}]
  %s8 = inlined_call_operand.vmem [shape: bf16[128,128], index: 8, kind: input, shape index: {}]
  %s9 = inlined_call_operand.vmem [shape: f32[128,1], index: 9, kind: input, shape index: {}]
  %s10 = inlined_call_operand.vmem [shape: bf16[128,128], index: 10, kind: input, shape index: {}]
  %s11 = inlined_call_operand.vmem [shape: f32[128,1], index: 11, kind: input, shape index: {}]
  %s12 = inlined_call_operand.vmem [shape: f32[2,128,256], index: 12, kind: output, shape index: {}]
  %s13 = sld [smem:[#allocation0]]
  $region85: #{cross_attention_block.1} parent=0
    _
  %s15 = ssub.s32 1, %s13
  %s16 = scalar_select 0, %s15, %s13
  loop: start=0, step=1, limit=4
  $region2: #{cross_attention_block.1} parent=0 // loop_pre_header
    _
  $region3: #{cross_attention_block.1} parent=0 // loop_header
    %s18 = sphi 0, %s22
    %p19 = scmp.ge.s32.totalorder %s18, 4
    %s25 = sphi 0, %s37
    %s26 = sphi 0, %s33
    %s27 = sphi 0, %s25
    %s28 = sphi 0, %s26
    %s29 = sphi 0, %s27
    %s30 = sphi 0, %s28
    %s42 = sphi 0, %s44
    %s45 = sphi 0, %s42
    %s46 = sphi 0, %s45
    %s62 = sphi 0, %s46
    %s68 = sphi 0, %s70
    %s71 = sphi 0, %s68
    %s72 = sphi 0, %s71
    %s88 = sphi 0, %s72
    %s92 = sphi 0, %s92
    %s94 = sphi 0, %s92
    %s95 = sphi 0, %s94
    %s109 = sphi 0, %s95
    %s113 = sphi 0, %s113
    %s115 = sphi 0, %s113
    %s116 = sphi 0, %s115
    %s130 = sphi 0, %s116
    %s134 = sphi 0, %s134
    %s136 = sphi 0, %s134
    %s137 = sphi 0, %s136
    %s151 = sphi 0, %s137
    %s155 = sphi 0, %s155
    %s157 = sphi 0, %s155
    %s158 = sphi 0, %s157
    %s172 = sphi 0, %s158
    %s176 = sphi 0, %s176
    %s178 = sphi 0, %s176
    %s179 = sphi 0, %s178
    %s193 = sphi 0, %s179
    %s197 = sphi 0, %s197
    %s199 = sphi 0, %s197
    %s200 = sphi 0, %s199
    %s214 = sphi 0, %s200
    %s218 = sphi 0, %s218
    %s220 = sphi 0, %s218
    %s221 = sphi 0, %s220
    %s235 = sphi 0, %s221
    %s239 = sphi 0, %s239
    %s241 = sphi 0, %s239
    %s242 = sphi 0, %s241
    %s256 = sphi 0, %s242
    %s260 = sphi 0, %s260
    %s262 = sphi 0, %s260
    %s263 = sphi 0, %s262
    %s277 = sphi 0, %s263
    %s281 = sphi 0, %s281
    %s283 = sphi 0, %s281
    %s284 = sphi 0, %s283
    %s298 = sphi 0, %s284
    %s306 = sphi 0, %s308
    %s309 = sphi 0, %s306
    %s310 = sphi 0, %s309
    %s326 = sphi 0, %s310
  $region4: #{cross_attention_block.1} parent=0 // loop_header_branch
    %21 = sbr.rel (%p19) target = $region8
  $region5: #{cross_attention_block.1} parent=0 // loop_body
    %s23 = ssub.s32 %s18, 1
    %s24 = ssub.s32 %s18, 2
    %s31 = sadd.s32 1, %s26
    %p32 = scmp.ge.s32.totalorder %s31, 1
    %s33 = scalar_select %p32, 0, %s31
    %s34 = sadd.s32 1, %s25
    %s35 = scalar_select %p32, %s34, %s25
    %p36 = scmp.ge.s32.totalorder %s35, 2
    %s37 = scalar_select %p36, 0, %s35
    %s38 = ssub.s32 %s25, %s37
    %s39 = ssub.s32 %s26, %s33
    %s40 = sor.u32 %s38, %s39
    %p41 = scmp.eq.s32.totalorder %s40, 0
    %s43 = sadd.s32 %s42, 1
    %s44 = scalar_select %p41, %s42, %s43
    %p47 = pneg %p41
    %p48 = scmp.eq.s32.totalorder %s18, 1
    %p49 = por %p47, %p48
    %p50 = scmp.ne.s32.totalorder %s42, %s45
    %p51 = scmp.eq.s32.totalorder %s18, 0
    %p52 = por %p50, %p51
    %p53 = scmp.ne.s32.totalorder %s42, %s45
    %p54 = scmp.eq.s32.totalorder %s23, 1
    %p55 = por %p53, %p54
    %p56 = scmp.ne.s32.totalorder %s45, %s46
    %p57 = scmp.eq.s32.totalorder %s23, 0
    %p58 = por %p56, %p57
    %p59 = scmp.ne.s32.totalorder %s45, %s46
    %p60 = scmp.eq.s32.totalorder %s24, 1
    %p61 = por %p59, %p60
    %p63 = scmp.ne.s32.totalorder %s46, %s62
    %p64 = scmp.eq.s32.totalorder %s24, 0
    %p65 = por %p63, %p64
    %s66 = ssub.s32 %s25, %s37
    %p67 = scmp.eq.s32.totalorder %s66, 0
    %s69 = sadd.s32 %s68, 1
    %s70 = scalar_select %p67, %s68, %s69
    %p73 = pneg %p67
    %p74 = scmp.eq.s32.totalorder %s18, 1
    %p75 = por %p73, %p74
    %p76 = scmp.ne.s32.totalorder %s68, %s71
    %p77 = scmp.eq.s32.totalorder %s18, 0
    %p78 = por %p76, %p77
    %p79 = scmp.ne.s32.totalorder %s68, %s71
    %p80 = scmp.eq.s32.totalorder %s23, 1
    %p81 = por %p79, %p80
    %p82 = scmp.ne.s32.totalorder %s71, %s72
    %p83 = scmp.eq.s32.totalorder %s23, 0
    %p84 = por %p82, %p83
    %p85 = scmp.ne.s32.totalorder %s71, %s72
    %p86 = scmp.eq.s32.totalorder %s24, 1
    %p87 = por %p85, %p86
    %p89 = scmp.ne.s32.totalorder %s72, %s88
    %p90 = scmp.eq.s32.totalorder %s24, 0
    %p91 = por %p89, %p90
    %s93 = sadd.s32 %s92, 1
    %p96 = scmp.eq.s32.totalorder %s18, 1
    %p97 = scmp.ne.s32.totalorder %s92, %s94
    %p98 = scmp.eq.s32.totalorder %s18, 0
    %p99 = por %p97, %p98
    %p100 = scmp.ne.s32.totalorder %s92, %s94
    %p101 = scmp.eq.s32.totalorder %s23, 1
    %p102 = por %p100, %p101
    %p103 = scmp.ne.s32.totalorder %s94, %s95
    %p104 = scmp.eq.s32.totalorder %s23, 0
    %p105 = por %p103, %p104
    %p106 = scmp.ne.s32.totalorder %s94, %s95
    %p107 = scmp.eq.s32.totalorder %s24, 1
    %p108 = por %p106, %p107
    %p110 = scmp.ne.s32.totalorder %s95, %s109
    %p111 = scmp.eq.s32.totalorder %s24, 0
    %p112 = por %p110, %p111
    %s114 = sadd.s32 %s113, 1
    %p117 = scmp.eq.s32.totalorder %s18, 1
    %p118 = scmp.ne.s32.totalorder %s113, %s115
    %p119 = scmp.eq.s32.totalorder %s18, 0
    %p120 = por %p118, %p119
    %p121 = scmp.ne.s32.totalorder %s113, %s115
    %p122 = scmp.eq.s32.totalorder %s23, 1
    %p123 = por %p121, %p122
    %p124 = scmp.ne.s32.totalorder %s115, %s116
    %p125 = scmp.eq.s32.totalorder %s23, 0
    %p126 = por %p124, %p125
    %p127 = scmp.ne.s32.totalorder %s115, %s116
    %p128 = scmp.eq.s32.totalorder %s24, 1
    %p129 = por %p127, %p128
    %p131 = scmp.ne.s32.totalorder %s116, %s130
    %p132 = scmp.eq.s32.totalorder %s24, 0
    %p133 = por %p131, %p132
    %s135 = sadd.s32 %s134, 1
    %p138 = scmp.eq.s32.totalorder %s18, 1
    %p139 = scmp.ne.s32.totalorder %s134, %s136
    %p140 = scmp.eq.s32.totalorder %s18, 0
    %p141 = por %p139, %p140
    %p142 = scmp.ne.s32.totalorder %s134, %s136
    %p143 = scmp.eq.s32.totalorder %s23, 1
    %p144 = por %p142, %p143
    %p145 = scmp.ne.s32.totalorder %s136, %s137
    %p146 = scmp.eq.s32.totalorder %s23, 0
    %p147 = por %p145, %p146
    %p148 = scmp.ne.s32.totalorder %s136, %s137
    %p149 = scmp.eq.s32.totalorder %s24, 1
    %p150 = por %p148, %p149
    %p152 = scmp.ne.s32.totalorder %s137, %s151
    %p153 = scmp.eq.s32.totalorder %s24, 0
    %p154 = por %p152, %p153
    %s156 = sadd.s32 %s155, 1
    %p159 = scmp.eq.s32.totalorder %s18, 1
    %p160 = scmp.ne.s32.totalorder %s155, %s157
    %p161 = scmp.eq.s32.totalorder %s18, 0
    %p162 = por %p160, %p161
    %p163 = scmp.ne.s32.totalorder %s155, %s157
    %p164 = scmp.eq.s32.totalorder %s23, 1
    %p165 = por %p163, %p164
    %p166 = scmp.ne.s32.totalorder %s157, %s158
    %p167 = scmp.eq.s32.totalorder %s23, 0
    %p168 = por %p166, %p167
    %p169 = scmp.ne.s32.totalorder %s157, %s158
    %p170 = scmp.eq.s32.totalorder %s24, 1
    %p171 = por %p169, %p170
    %p173 = scmp.ne.s32.totalorder %s158, %s172
    %p174 = scmp.eq.s32.totalorder %s24, 0
    %p175 = por %p173, %p174
    %s177 = sadd.s32 %s176, 1
    %p180 = scmp.eq.s32.totalorder %s18, 1
    %p181 = scmp.ne.s32.totalorder %s176, %s178
    %p182 = scmp.eq.s32.totalorder %s18, 0
    %p183 = por %p181, %p182
    %p184 = scmp.ne.s32.totalorder %s176, %s178
    %p185 = scmp.eq.s32.totalorder %s23, 1
    %p186 = por %p184, %p185
    %p187 = scmp.ne.s32.totalorder %s178, %s179
    %p188 = scmp.eq.s32.totalorder %s23, 0
    %p189 = por %p187, %p188
    %p190 = scmp.ne.s32.totalorder %s178, %s179
    %p191 = scmp.eq.s32.totalorder %s24, 1
    %p192 = por %p190, %p191
    %p194 = scmp.ne.s32.totalorder %s179, %s193
    %p195 = scmp.eq.s32.totalorder %s24, 0
    %p196 = por %p194, %p195
    %s198 = sadd.s32 %s197, 1
    %p201 = scmp.eq.s32.totalorder %s18, 1
    %p202 = scmp.ne.s32.totalorder %s197, %s199
    %p203 = scmp.eq.s32.totalorder %s18, 0
    %p204 = por %p202, %p203
    %p205 = scmp.ne.s32.totalorder %s197, %s199
    %p206 = scmp.eq.s32.totalorder %s23, 1
    %p207 = por %p205, %p206
    %p208 = scmp.ne.s32.totalorder %s199, %s200
    %p209 = scmp.eq.s32.totalorder %s23, 0
    %p210 = por %p208, %p209
    %p211 = scmp.ne.s32.totalorder %s199, %s200
    %p212 = scmp.eq.s32.totalorder %s24, 1
    %p213 = por %p211, %p212
    %p215 = scmp.ne.s32.totalorder %s200, %s214
    %p216 = scmp.eq.s32.totalorder %s24, 0
    %p217 = por %p215, %p216
    %s219 = sadd.s32 %s218, 1
    %p222 = scmp.eq.s32.totalorder %s18, 1
    %p223 = scmp.ne.s32.totalorder %s218, %s220
    %p224 = scmp.eq.s32.totalorder %s18, 0
    %p225 = por %p223, %p224
    %p226 = scmp.ne.s32.totalorder %s218, %s220
    %p227 = scmp.eq.s32.totalorder %s23, 1
    %p228 = por %p226, %p227
    %p229 = scmp.ne.s32.totalorder %s220, %s221
    %p230 = scmp.eq.s32.totalorder %s23, 0
    %p231 = por %p229, %p230
    %p232 = scmp.ne.s32.totalorder %s220, %s221
    %p233 = scmp.eq.s32.totalorder %s24, 1
    %p234 = por %p232, %p233
    %p236 = scmp.ne.s32.totalorder %s221, %s235
    %p237 = scmp.eq.s32.totalorder %s24, 0
    %p238 = por %p236, %p237
    %s240 = sadd.s32 %s239, 1
    %p243 = scmp.eq.s32.totalorder %s18, 1
    %p244 = scmp.ne.s32.totalorder %s239, %s241
    %p245 = scmp.eq.s32.totalorder %s18, 0
    %p246 = por %p244, %p245
    %p247 = scmp.ne.s32.totalorder %s239, %s241
    %p248 = scmp.eq.s32.totalorder %s23, 1
    %p249 = por %p247, %p248
    %p250 = scmp.ne.s32.totalorder %s241, %s242
    %p251 = scmp.eq.s32.totalorder %s23, 0
    %p252 = por %p250, %p251
    %p253 = scmp.ne.s32.totalorder %s241, %s242
    %p254 = scmp.eq.s32.totalorder %s24, 1
    %p255 = por %p253, %p254
    %p257 = scmp.ne.s32.totalorder %s242, %s256
    %p258 = scmp.eq.s32.totalorder %s24, 0
    %p259 = por %p257, %p258
    %s261 = sadd.s32 %s260, 1
    %p264 = scmp.eq.s32.totalorder %s18, 1
    %p265 = scmp.ne.s32.totalorder %s260, %s262
    %p266 = scmp.eq.s32.totalorder %s18, 0
    %p267 = por %p265, %p266
    %p268 = scmp.ne.s32.totalorder %s260, %s262
    %p269 = scmp.eq.s32.totalorder %s23, 1
    %p270 = por %p268, %p269
    %p271 = scmp.ne.s32.totalorder %s262, %s263
    %p272 = scmp.eq.s32.totalorder %s23, 0
    %p273 = por %p271, %p272
    %p274 = scmp.ne.s32.totalorder %s262, %s263
    %p275 = scmp.eq.s32.totalorder %s24, 1
    %p276 = por %p274, %p275
    %p278 = scmp.ne.s32.totalorder %s263, %s277
    %p279 = scmp.eq.s32.totalorder %s24, 0
    %p280 = por %p278, %p279
    %s282 = sadd.s32 %s281, 1
    %p285 = scmp.eq.s32.totalorder %s18, 1
    %p286 = scmp.ne.s32.totalorder %s281, %s283
    %p287 = scmp.eq.s32.totalorder %s18, 0
    %p288 = por %p286, %p287
    %p289 = scmp.ne.s32.totalorder %s281, %s283
    %p290 = scmp.eq.s32.totalorder %s23, 1
    %p291 = por %p289, %p290
    %p292 = scmp.ne.s32.totalorder %s283, %s284
    %p293 = scmp.eq.s32.totalorder %s23, 0
    %p294 = por %p292, %p293
    %p295 = scmp.ne.s32.totalorder %s283, %s284
    %p296 = scmp.eq.s32.totalorder %s24, 1
    %p297 = por %p295, %p296
    %p299 = scmp.ne.s32.totalorder %s284, %s298
    %p300 = scmp.eq.s32.totalorder %s24, 0
    %p301 = por %p299, %p300
    %s302 = ssub.s32 %s25, %s37
    %s303 = ssub.s32 %s26, %s33
    %s304 = sor.u32 %s302, %s303
    %p305 = scmp.eq.s32.totalorder %s304, 0
    %s307 = sadd.s32 %s306, 1
    %s308 = scalar_select %p305, %s306, %s307
    %p311 = pneg %p305
    %p312 = scmp.eq.s32.totalorder %s18, 1
    %p313 = por %p311, %p312
    %p314 = scmp.ne.s32.totalorder %s306, %s309
    %p315 = scmp.eq.s32.totalorder %s18, 0
    %p316 = por %p314, %p315
    %p317 = scmp.ne.s32.totalorder %s306, %s309
    %p318 = scmp.eq.s32.totalorder %s23, 1
    %p319 = por %p317, %p318
    %p320 = scmp.ne.s32.totalorder %s309, %s310
    %p321 = scmp.eq.s32.totalorder %s23, 0
    %p322 = por %p320, %p321
    %p323 = scmp.ne.s32.totalorder %s309, %s310
    %p324 = scmp.eq.s32.totalorder %s24, 1
    %p325 = por %p323, %p324
    %p327 = scmp.ne.s32.totalorder %s310, %s326
    %p328 = scmp.eq.s32.totalorder %s24, 0
    %p329 = por %p327, %p328
    %p330 = scmp.le.s32.totalorder 1, %s18
    %p331 = scmp.lt.s32.totalorder %s18, 3
    %p332 = pnand %p330, %p331
    %p333 = pneg %p332
    // Predicated region
    $region9: #{cross_attention_block.1} parent=5 // pred_check
      _
    $region10: #{cross_attention_block.1} parent=5 // pred_check_branch
      %335 = sbr.rel (%p332) target = $region12
    $region11: #{cross_attention_block.1} parent=5 // pred_region
      %s336 = ssub.s32 %s18, 1
      // Predicated region
      $region13: #{cross_attention_block.1} parent=11 // pred_check
        %p337 = pneg %p105
      $region14: #{cross_attention_block.1} parent=11 // pred_check_branch
        %339 = sbr.rel (%p337) target = $region16
      $region15: #{cross_attention_block.1} parent=11 // pred_region
        _
      $region16: #{cross_attention_block.1} parent=11 // pred_fallthru
        _
      // Predicated region
      $region17: #{cross_attention_block.1} parent=11 // pred_check
        %p340 = pneg %p126
      $region18: #{cross_attention_block.1} parent=11 // pred_check_branch
        %342 = sbr.rel (%p340) target = $region20
      $region19: #{cross_attention_block.1} parent=11 // pred_region
        _
      $region20: #{cross_attention_block.1} parent=11 // pred_fallthru
        _
      // Predicated region
      $region21: #{cross_attention_block.1} parent=11 // pred_check
        %p343 = pneg %p147
      $region22: #{cross_attention_block.1} parent=11 // pred_check_branch
        %345 = sbr.rel (%p343) target = $region24
      $region23: #{cross_attention_block.1} parent=11 // pred_region
        _
      $region24: #{cross_attention_block.1} parent=11 // pred_fallthru
        _
      // Predicated region
      $region25: #{cross_attention_block.1} parent=11 // pred_check
        %p346 = pneg %p168
      $region26: #{cross_attention_block.1} parent=11 // pred_check_branch
        %348 = sbr.rel (%p346) target = $region28
      $region27: #{cross_attention_block.1} parent=11 // pred_region
        _
      $region28: #{cross_attention_block.1} parent=11 // pred_fallthru
        _
      // Predicated region
      $region29: #{cross_attention_block.1} parent=11 // pred_check
        %p349 = pneg %p189
      $region30: #{cross_attention_block.1} parent=11 // pred_check_branch
        %351 = sbr.rel (%p349) target = $region32
      $region31: #{cross_attention_block.1} parent=11 // pred_region
        _
      $region32: #{cross_attention_block.1} parent=11 // pred_fallthru
        _
      // Predicated region
      $region33: #{cross_attention_block.1} parent=11 // pred_check
        %p352 = pneg %p210
      $region34: #{cross_attention_block.1} parent=11 // pred_check_branch
        %354 = sbr.rel (%p352) target = $region36
      $region35: #{cross_attention_block.1} parent=11 // pred_region
        _
      $region36: #{cross_attention_block.1} parent=11 // pred_fallthru
        _
      // Predicated region
      $region37: #{cross_attention_block.1} parent=11 // pred_check
        %p355 = pneg %p231
      $region38: #{cross_attention_block.1} parent=11 // pred_check_branch
        %357 = sbr.rel (%p355) target = $region40
      $region39: #{cross_attention_block.1} parent=11 // pred_region
        _
      $region40: #{cross_attention_block.1} parent=11 // pred_fallthru
        _
      // Predicated region
      $region41: #{cross_attention_block.1} parent=11 // pred_check
        %p358 = pneg %p252
      $region42: #{cross_attention_block.1} parent=11 // pred_check_branch
        %360 = sbr.rel (%p358) target = $region44
      $region43: #{cross_attention_block.1} parent=11 // pred_region
        _
      $region44: #{cross_attention_block.1} parent=11 // pred_fallthru
        _
      // Predicated region
      $region45: #{cross_attention_block.1} parent=11 // pred_check
        %p361 = pneg %p273
      $region46: #{cross_attention_block.1} parent=11 // pred_check_branch
        %363 = sbr.rel (%p361) target = $region48
      $region47: #{cross_attention_block.1} parent=11 // pred_region
        _
      $region48: #{cross_attention_block.1} parent=11 // pred_fallthru
        _
      // Predicated region
      $region49: #{cross_attention_block.1} parent=11 // pred_check
        %p364 = pneg %p294
      $region50: #{cross_attention_block.1} parent=11 // pred_check_branch
        %366 = sbr.rel (%p364) target = $region52
      $region51: #{cross_attention_block.1} parent=11 // pred_region
        _
      $region52: #{cross_attention_block.1} parent=11 // pred_fallthru
        _
    $region12: #{cross_attention_block.1} parent=5 // pred_fallthru
      _
    %p367 = scmp.lt.s32.totalorder %s18, 2
    // Predicated region
    $region53: #{cross_attention_block.1} parent=5 // pred_check
      %p368 = pneg %p367
    $region54: #{cross_attention_block.1} parent=5 // pred_check_branch
      %370 = sbr.rel (%p368) target = $region56
    $region55: #{cross_attention_block.1} parent=5 // pred_region
      // Predicated region
      $region57: #{cross_attention_block.1} parent=55 // pred_check
        %p371 = pneg %p52
      $region58: #{cross_attention_block.1} parent=55 // pred_check_branch
        %373 = sbr.rel (%p371) target = $region60
      $region59: #{cross_attention_block.1} parent=55 // pred_region
        %s374 = smul.u32 2, %s26
        %p375 = scmp.lt.s32.totalorder %s25, 1
        %s376 = scalar_select %p375, %s25, 1
        %p377 = scmp.lt.s32.totalorder %s374, 1
        %s378 = scalar_select %p377, %s374, 1
        %s379 = smul.addr %s376, 32
        %s380 = sadd.s32 %s378, %s379
        %s381 = smul.addr %s380, 8
        %s382 = scalar_lea.vmem %s0, %s381
        %s383 = smul.u32 2, %s26
      $region60: #{cross_attention_block.1} parent=55 // pred_fallthru
        _
      // Predicated region
      $region61: #{cross_attention_block.1} parent=55 // pred_check
        %p384 = pneg %p78
      $region62: #{cross_attention_block.1} parent=55 // pred_check_branch
        %386 = sbr.rel (%p384) target = $region64
      $region63: #{cross_attention_block.1} parent=55 // pred_region
        %p387 = scmp.lt.s32.totalorder %s25, 1
        %s388 = scalar_select %p387, %s25, 1
        %s389 = smul.addr %s388, 16
        %s390 = smul.addr %s389, 4
        %s391 = scalar_lea.vmem %s1, %s390
      $region64: #{cross_attention_block.1} parent=55 // pred_fallthru
        _
    $region56: #{cross_attention_block.1} parent=5 // pred_fallthru
      _
    %p392 = scmp.le.s32.totalorder 1, %s18
    %p393 = scmp.lt.s32.totalorder %s18, 3
    %p394 = pnand %p392, %p393
    %p395 = pneg %p394
    // Predicated region
    $region65: #{cross_attention_block.1} parent=5 // pred_check
      _
    $region66: #{cross_attention_block.1} parent=5 // pred_check_branch
      %397 = sbr.rel (%p394) target = $region68
    $region67: #{cross_attention_block.1} parent=5 // pred_region
      %s398 = ssub.s32 %s18, 1
      %s399 = smul.u32 2, %s28
      %p400 = scmp.lt.s32.totalorder %s27, 1
      %s401 = scalar_select %p400, %s27, 1
      %p402 = scmp.lt.s32.totalorder %s399, 1
      %s403 = scalar_select %p402, %s399, 1
      %s404 = smul.addr %s401, 32
      %s405 = sadd.s32 %s403, %s404
      %s406 = smul.addr %s405, 8
      %s407 = scalar_lea.vmem %s0, %s406
      %p408 = pneg %p58
      %p409 = pneg %p55
      %p410 = scmp.lt.s32.totalorder %s27, 1
      %s411 = scalar_select %p410, %s27, 1
      %s412 = smul.addr %s411, 16
      %s413 = smul.addr %s412, 4
      %s414 = scalar_lea.vmem %s1, %s413
      %p415 = pneg %p84
      %p416 = pneg %p81
      %p417 = pneg %p105
      %p418 = pneg %p102
      %p419 = pneg %p126
      %p420 = pneg %p123
      %p421 = pneg %p147
      %p422 = pneg %p144
      %p423 = pneg %p168
      %p424 = pneg %p165
      %p425 = pneg %p189
      %p426 = pneg %p186
      %p427 = pneg %p210
      %p428 = pneg %p207
      %p429 = pneg %p231
      %p430 = pneg %p228
      %p431 = pneg %p252
      %p432 = pneg %p249
      %p433 = pneg %p273
      %p434 = pneg %p270
      %p435 = pneg %p294
      %p436 = pneg %p291
      %p437 = pneg %p322
      %p438 = pneg %p319
      %s439 = smul.u32 2, %s28
      %p440 = scmp.lt.s32.totalorder %s27, 1
      %s441 = scalar_select %p440, %s27, 1
      %p442 = scmp.lt.s32.totalorder %s439, 1
      %s443 = scalar_select %p442, %s439, 1
      %s444 = smul.addr %s441, 32
      %s445 = sadd.s32 %s443, %s444
      %s446 = smul.addr %s445, 8
      %s447 = scalar_lea.vmem %s12, %s446
      %s448 = smul.u32 2, %s28
      %p449 = scmp.lt.s32.totalorder %s27, 1
      %s450 = scalar_select %p449, %s27, 1
      %p451 = scmp.lt.s32.totalorder %s448, 1
      %s452 = scalar_select %p451, %s448, 1
      %s453 = smul.addr %s450, 32
      %s454 = sadd.s32 %s452, %s453
      %s455 = smul.addr %s454, 8
      %s456 = scalar_lea.vmem %s0, %s455
      %s457 = smul.u32 2, %s28
      %p458 = scmp.lt.s32.totalorder %s27, 1
      %s459 = scalar_select %p458, %s27, 1
      %s460 = smul.addr %s459, 16
      %s461 = smul.addr %s460, 4
      %s462 = scalar_lea.vmem %s1, %s461
      %s463 = smul.u32 2, %s28
      %p464 = scmp.lt.s32.totalorder %s27, 1
      %s465 = scalar_select %p464, %s27, 1
      %p466 = scmp.lt.s32.totalorder %s463, 1
      %s467 = scalar_select %p466, %s463, 1
      %s468 = smul.addr %s465, 32
      %s469 = sadd.s32 %s467, %s468
      %s470 = smul.addr %s469, 8
      %s471 = scalar_lea.vmem %s12, %s470
      %s472 = smul.u32 2, %s28
      %p475 = scmp.eq.s32.totalorder %s28, 0
      // Predicated region
      $region69: #{cross_attention_block.1} parent=67 // pred_check
        %p476 = pneg %p475
      $region70: #{cross_attention_block.1} parent=67 // pred_check_branch
        %478 = sbr.rel (%p476) target = $region72
      $region71: #{cross_attention_block.1} parent=67 // pred_region
        %v479 = vld [vmem:[%s462] sm:$0xf]
        %v480 = vld [vmem:[%s462 + $0x4] sm:$0xf]
        %v481 = vld [vmem:[%s462 + $0x8] sm:$0xf]
        %v482 = vld [vmem:[%s462 + $0xc] sm:$0xf]
        %v483 = vld [vmem:[%s462 + $0x10] sm:$0xf]
        %v484 = vld [vmem:[%s462 + $0x14] sm:$0xf]
        %v485 = vld [vmem:[%s462 + $0x18] sm:$0xf]
        %v486 = vld [vmem:[%s462 + $0x1c] sm:$0xf]
        %v487 = vld [vmem:[%s462 + $0x20] sm:$0xf]
        %v488 = vld [vmem:[%s462 + $0x24] sm:$0xf]
        %v489 = vld [vmem:[%s462 + $0x28] sm:$0xf]
        %v490 = vld [vmem:[%s462 + $0x2c] sm:$0xf]
        %v491 = vld [vmem:[%s462 + $0x30] sm:$0xf]
        %v492 = vld [vmem:[%s462 + $0x34] sm:$0xf]
        %v493 = vld [vmem:[%s462 + $0x38] sm:$0xf]
        %v494 = vld [vmem:[%s462 + $0x3c] sm:$0xf]
        %v495 = vld [vmem:[%s4] sm:$0xf]
        %v496 = vld [vmem:[%s4 + $0x4] sm:$0xf]
        %v497 = vld [vmem:[%s4 + $0x8] sm:$0xf]
        %v498 = vld [vmem:[%s4 + $0xc] sm:$0xf]
        %v499 = vld [vmem:[%s4 + $0x10] sm:$0xf]
        %v500 = vld [vmem:[%s4 + $0x14] sm:$0xf]
        %v501 = vld [vmem:[%s4 + $0x18] sm:$0xf]
        %v502 = vld [vmem:[%s4 + $0x1c] sm:$0xf]
        %v503 = vld [vmem:[%s4 + $0x20] sm:$0xf]
        %v504 = vld [vmem:[%s4 + $0x24] sm:$0xf]
        %v505 = vld [vmem:[%s4 + $0x28] sm:$0xf]
        %v506 = vld [vmem:[%s4 + $0x2c] sm:$0xf]
        %v507 = vld [vmem:[%s4 + $0x30] sm:$0xf]
        %v508 = vld [vmem:[%s4 + $0x34] sm:$0xf]
        %v509 = vld [vmem:[%s4 + $0x38] sm:$0xf]
        %v510 = vld [vmem:[%s4 + $0x3c] sm:$0xf]
        %v511 = vld [vmem:[%s5] sm:$0xff]
        %v512 = vld [vmem:[%s5 + $0x8] sm:$0xff]
        %v513 = vld [vmem:[%s5 + $0x10] sm:$0xff]
        %v514 = vld [vmem:[%s5 + $0x18] sm:$0xff]
        %v515 = vld [vmem:[%s5 + $0x20] sm:$0xff]
        %v516 = vld [vmem:[%s5 + $0x28] sm:$0xff]
        %v517 = vld [vmem:[%s5 + $0x30] sm:$0xff]
        %v518 = vld [vmem:[%s5 + $0x38] sm:$0xff]
        %v519 = vld [vmem:[%s5 + $0x40] sm:$0xff]
        %v520 = vld [vmem:[%s5 + $0x48] sm:$0xff]
        %v521 = vld [vmem:[%s5 + $0x50] sm:$0xff]
        %v522 = vld [vmem:[%s5 + $0x58] sm:$0xff]
        %v523 = vld [vmem:[%s5 + $0x60] sm:$0xff]
        %v524 = vld [vmem:[%s5 + $0x68] sm:$0xff]
        %v525 = vld [vmem:[%s5 + $0x70] sm:$0xff]
        %v526 = vld [vmem:[%s5 + $0x78] sm:$0xff]
        %528 = vset.pattern.permute.xlu0 0
        %529 = vperm.xlu0 %528, %v511
        %v530 = vpop.permute.xlu0 %529
        %533 = vset.pattern.permute.xlu0 0
        %534 = vperm.xlu0 %533, %v512
        %v535 = vpop.permute.xlu0 %534
        %538 = vset.pattern.permute.xlu0 0
        %539 = vperm.xlu0 %538, %v513
        %v540 = vpop.permute.xlu0 %539
        %543 = vset.pattern.permute.xlu0 0
        %544 = vperm.xlu0 %543, %v514
        %v545 = vpop.permute.xlu0 %544
        %548 = vset.pattern.permute.xlu0 0
        %549 = vperm.xlu0 %548, %v515
        %v550 = vpop.permute.xlu0 %549
        %553 = vset.pattern.permute.xlu0 0
        %554 = vperm.xlu0 %553, %v516
        %v555 = vpop.permute.xlu0 %554
        %558 = vset.pattern.permute.xlu0 0
        %559 = vperm.xlu0 %558, %v517
        %v560 = vpop.permute.xlu0 %559
        %563 = vset.pattern.permute.xlu0 0
        %564 = vperm.xlu0 %563, %v518
        %v565 = vpop.permute.xlu0 %564
        %568 = vset.pattern.permute.xlu0 0
        %569 = vperm.xlu0 %568, %v519
        %v570 = vpop.permute.xlu0 %569
        %573 = vset.pattern.permute.xlu0 0
        %574 = vperm.xlu0 %573, %v520
        %v575 = vpop.permute.xlu0 %574
        %578 = vset.pattern.permute.xlu0 0
        %579 = vperm.xlu0 %578, %v521
        %v580 = vpop.permute.xlu0 %579
        %583 = vset.pattern.permute.xlu0 0
        %584 = vperm.xlu0 %583, %v522
        %v585 = vpop.permute.xlu0 %584
        %588 = vset.pattern.permute.xlu0 0
        %589 = vperm.xlu0 %588, %v523
        %v590 = vpop.permute.xlu0 %589
        %593 = vset.pattern.permute.xlu0 0
        %594 = vperm.xlu0 %593, %v524
        %v595 = vpop.permute.xlu0 %594
        %598 = vset.pattern.permute.xlu0 0
        %599 = vperm.xlu0 %598, %v525
        %v600 = vpop.permute.xlu0 %599
        %603 = vset.pattern.permute.xlu0 0
        %604 = vperm.xlu0 %603, %v526
        %v605 = vpop.permute.xlu0 %604
        %v623 = vunpack.c.l.b16 %v495
        %v624 = vunpack.c.l.b16 %v496
        %v625 = vunpack.c.l.b16 %v497
        %v626 = vunpack.c.l.b16 %v498
        %v627 = vunpack.c.l.b16 %v499
        %v628 = vunpack.c.l.b16 %v500
        %v629 = vunpack.c.l.b16 %v501
        %v630 = vunpack.c.l.b16 %v502
        %v631 = vunpack.c.l.b16 %v503
        %v632 = vunpack.c.l.b16 %v504
        %v633 = vunpack.c.l.b16 %v505
        %v634 = vunpack.c.l.b16 %v506
        %v635 = vunpack.c.l.b16 %v507
        %v636 = vunpack.c.l.b16 %v508
        %v637 = vunpack.c.l.b16 %v509
        %v638 = vunpack.c.l.b16 %v510
        %v639 = vpack.c.b16 %v624, %v623
        %v640 = vpack.c.b16 %v626, %v625
        %v641 = vpack.c.b16 %v628, %v627
        %v642 = vpack.c.b16 %v630, %v629
        %v643 = vpack.c.b16 %v632, %v631
        %v644 = vpack.c.b16 %v634, %v633
        %v645 = vpack.c.b16 %v636, %v635
        %v646 = vpack.c.b16 %v638, %v637
        %v671 = vunpack.c.l.b16 %v479
        %v672 = vunpack.c.l.b16 %v480
        %v673 = vunpack.c.l.b16 %v481
        %v674 = vunpack.c.l.b16 %v482
        %v675 = vunpack.c.l.b16 %v483
        %v676 = vunpack.c.l.b16 %v484
        %v677 = vunpack.c.l.b16 %v485
        %v678 = vunpack.c.l.b16 %v486
        %v679 = vunpack.c.l.b16 %v487
        %v680 = vunpack.c.l.b16 %v488
        %v681 = vunpack.c.l.b16 %v489
        %v682 = vunpack.c.l.b16 %v490
        %v683 = vunpack.c.l.b16 %v491
        %v684 = vunpack.c.l.b16 %v492
        %v685 = vunpack.c.l.b16 %v493
        %v686 = vunpack.c.l.b16 %v494
        %v687 = vpack.c.b16 %v672, %v671
        %v688 = vpack.c.b16 %v674, %v673
        %v689 = vpack.c.b16 %v676, %v675
        %v690 = vpack.c.b16 %v678, %v677
        %v691 = vpack.c.b16 %v680, %v679
        %v692 = vpack.c.b16 %v682, %v681
        %v693 = vpack.c.b16 %v684, %v683
        %v694 = vpack.c.b16 %v686, %v685
        %703 = vmatprep.subr.bf16.mxu0 0
        %704 = vmatpush1.bf16.msra.mxu0 %v687
        %705 = vmatprep.subr.bf16.mxu0 0
        %706 = vmatpush1.bf16.msra.mxu0 %v688
        %707 = vmatprep.subr.bf16.mxu0 0
        %708 = vmatpush1.bf16.msra.mxu0 %v689
        %709 = vmatprep.subr.bf16.mxu0 0
        %710 = vmatpush1.bf16.msra.mxu0 %v690
        %711 = vmatprep.subr.bf16.mxu0 0
        %712 = vmatpush1.bf16.msra.mxu0 %v691
        %713 = vmatprep.subr.bf16.mxu0 0
        %714 = vmatpush1.bf16.msra.mxu0 %v692
        %715 = vmatprep.subr.bf16.mxu0 0
        %716 = vmatpush1.bf16.msra.mxu0 %v693
        %717 = vmatprep.subr.bf16.mxu0 0
        %718 = vmatpush1.bf16.msra.mxu0 %v694
        %719 = vmatprep.subr.bf16.mxu0 0
        %720 = vmatpush1.bf16.msra.mxu0 0
        %721 = vmatprep.subr.bf16.mxu0 0
        %722 = vmatpush1.bf16.msra.mxu0 0
        %723 = vmatprep.subr.bf16.mxu0 0
        %724 = vmatpush1.bf16.msra.mxu0 0
        %725 = vmatprep.subr.bf16.mxu0 0
        %726 = vmatpush1.bf16.msra.mxu0 0
        %727 = vmatprep.subr.bf16.mxu0 0
        %728 = vmatpush1.bf16.msra.mxu0 0
        %729 = vmatprep.subr.bf16.mxu0 0
        %730 = vmatpush1.bf16.msra.mxu0 0
        %731 = vmatprep.subr.bf16.mxu0 0
        %732 = vmatpush1.bf16.msra.mxu0 0
        %733 = vmatprep.subr.bf16.mxu0 0
        %734 = vmatpush1.bf16.msra.mxu0 0
        %735 = vmatprep.mubr.bf16.mxu0 0
        %736 = vmatmul.mubr.bf16.gmra.mrb[0].mxu0 %v639
        %v737 = vpop.f32.mrb[0].mxu0
        %v738 = vadd.f32 %v530, %v737
        %v739 = vpop.f32.mrb[0].mxu0
        %v740 = vpop.f32.mrb[0].mxu0
        %v741 = vadd.f32 %v535, %v740
        %v742 = vpop.f32.mrb[0].mxu0
        %743 = vmatprep.mubr.bf16.mxu0 0
        %744 = vmatmul.mubr.bf16.gmra.mrb[0].mxu0 %v640
        %v745 = vpop.f32.mrb[0].mxu0
        %v746 = vadd.f32 %v540, %v745
        %v747 = vpop.f32.mrb[0].mxu0
        %v748 = vpop.f32.mrb[0].mxu0
        %v749 = vadd.f32 %v545, %v748
        %v750 = vpop.f32.mrb[0].mxu0
        %751 = vmatprep.mubr.bf16.mxu0 0
        %752 = vmatmul.mubr.bf16.gmra.mrb[0].mxu0 %v641
        %v753 = vpop.f32.mrb[0].mxu0
        %v754 = vadd.f32 %v550, %v753
        %v755 = vpop.f32.mrb[0].mxu0
        %v756 = vpop.f32.mrb[0].mxu0
        %v757 = vadd.f32 %v555, %v756
        %v758 = vpop.f32.mrb[0].mxu0
        %759 = vmatprep.mubr.bf16.mxu0 0
        %760 = vmatmul.mubr.bf16.gmra.mrb[0].mxu0 %v642
        %v761 = vpop.f32.mrb[0].mxu0
        %v762 = vadd.f32 %v560, %v761
        %v763 = vpop.f32.mrb[0].mxu0
        %v764 = vpop.f32.mrb[0].mxu0
        %v765 = vadd.f32 %v565, %v764
        %v766 = vpop.f32.mrb[0].mxu0
        %767 = vmatprep.mubr.bf16.mxu0 0
        %768 = vmatmul.mubr.bf16.gmra.mrb[0].mxu0 %v643
        %v769 = vpop.f32.mrb[0].mxu0
        %v770 = vadd.f32 %v570, %v769
        %v771 = vpop.f32.mrb[0].mxu0
        %v772 = vpop.f32.mrb[0].mxu0
        %v773 = vadd.f32 %v575, %v772
        %v774 = vpop.f32.mrb[0].mxu0
        %775 = vmatprep.mubr.bf16.mxu0 0
        %776 = vmatmul.mubr.bf16.gmra.mrb[0].mxu0 %v644
        %v777 = vpop.f32.mrb[0].mxu0
        %v778 = vadd.f32 %v580, %v777
        %v779 = vpop.f32.mrb[0].mxu0
        %v780 = vpop.f32.mrb[0].mxu0
        %v781 = vadd.f32 %v585, %v780
        %v782 = vpop.f32.mrb[0].mxu0
        %783 = vmatprep.mubr.bf16.mxu0 0
        %784 = vmatmul.mubr.bf16.gmra.mrb[0].mxu0 %v645
        %v785 = vpop.f32.mrb[0].mxu0
        %v786 = vadd.f32 %v590, %v785
        %v787 = vpop.f32.mrb[0].mxu0
        %v788 = vpop.f32.mrb[0].mxu0
        %v789 = vadd.f32 %v595, %v788
        %v790 = vpop.f32.mrb[0].mxu0
        %791 = vmatprep.mubr.bf16.mxu0 0
        %792 = vmatmul.mubr.bf16.gmra.mrb[0].mxu0 %v646
        %v793 = vpop.f32.mrb[0].mxu0
        %v794 = vadd.f32 %v600, %v793
        %v795 = vpop.f32.mrb[0].mxu0
        %v796 = vpop.f32.mrb[0].mxu0
        %v797 = vadd.f32 %v605, %v796
        %v798 = vpop.f32.mrb[0].mxu0
        %799 = vdwg.mxu0
        %v800 = vpack.c.bf16 %v741, %v738
        %v801 = vpack.c.bf16 %v749, %v746
        %v802 = vpack.c.bf16 %v757, %v754
        %v803 = vpack.c.bf16 %v765, %v762
        %v804 = vpack.c.bf16 %v773, %v770
        %v805 = vpack.c.bf16 %v781, %v778
        %v806 = vpack.c.bf16 %v789, %v786
        %v807 = vpack.c.bf16 %v797, %v794
        %808 = vst [vmem:[#allocation2] sm:$0xff] %v800
        %809 = vst [vmem:[#allocation2 + $0x8] sm:$0xff] %v801
        %810 = vst [vmem:[#allocation2 + $0x10] sm:$0xff] %v802
        %811 = vst [vmem:[#allocation2 + $0x18] sm:$0xff] %v803
        %812 = vst [vmem:[#allocation2 + $0x20] sm:$0xff] %v804
        %813 = vst [vmem:[#allocation2 + $0x28] sm:$0xff] %v805
        %814 = vst [vmem:[#allocation2 + $0x30] sm:$0xff] %v806
        %815 = vst [vmem:[#allocation2 + $0x38] sm:$0xff] %v807
      $region72: #{cross_attention_block.1} parent=67 // pred_fallthru
        _
      %v816 = vld [vmem:[%s456] sm:$0xff]
      %v817 = vld [vmem:[%s456 + $0x8] sm:$0xff]
      %v818 = vld [vmem:[%s456 + $0x10] sm:$0xff]
      %v819 = vld [vmem:[%s456 + $0x18] sm:$0xff]
      %v820 = vld [vmem:[%s456 + $0x20] sm:$0xff]
      %v821 = vld [vmem:[%s456 + $0x28] sm:$0xff]
      %v822 = vld [vmem:[%s456 + $0x30] sm:$0xff]
      %v823 = vld [vmem:[%s456 + $0x38] sm:$0xff]
      %v824 = vld [vmem:[%s456 + $0x40] sm:$0xff]
      %v825 = vld [vmem:[%s456 + $0x48] sm:$0xff]
      %v826 = vld [vmem:[%s456 + $0x50] sm:$0xff]
      %v827 = vld [vmem:[%s456 + $0x58] sm:$0xff]
      %v828 = vld [vmem:[%s456 + $0x60] sm:$0xff]
      %v829 = vld [vmem:[%s456 + $0x68] sm:$0xff]
      %v830 = vld [vmem:[%s456 + $0x70] sm:$0xff]
      %v831 = vld [vmem:[%s456 + $0x78] sm:$0xff]
      %v832 = vld [vmem:[%s456 + $0x80] sm:$0xff]
      %v833 = vld [vmem:[%s456 + $0x88] sm:$0xff]
      %v834 = vld [vmem:[%s456 + $0x90] sm:$0xff]
      %v835 = vld [vmem:[%s456 + $0x98] sm:$0xff]
      %v836 = vld [vmem:[%s456 + $0xa0] sm:$0xff]
      %v837 = vld [vmem:[%s456 + $0xa8] sm:$0xff]
      %v838 = vld [vmem:[%s456 + $0xb0] sm:$0xff]
      %v839 = vld [vmem:[%s456 + $0xb8] sm:$0xff]
      %v840 = vld [vmem:[%s456 + $0xc0] sm:$0xff]
      %v841 = vld [vmem:[%s456 + $0xc8] sm:$0xff]
      %v842 = vld [vmem:[%s456 + $0xd0] sm:$0xff]
      %v843 = vld [vmem:[%s456 + $0xd8] sm:$0xff]
      %v844 = vld [vmem:[%s456 + $0xe0] sm:$0xff]
      %v845 = vld [vmem:[%s456 + $0xe8] sm:$0xff]
      %v846 = vld [vmem:[%s456 + $0xf0] sm:$0xff]
      %v847 = vld [vmem:[%s456 + $0xf8] sm:$0xff]
      %v848 = vpack.c.bf16 %v818, %v816
      %v849 = vpack.c.bf16 %v819, %v817
      %v850 = vpack.c.bf16 %v822, %v820
      %v851 = vpack.c.bf16 %v823, %v821
      %v852 = vpack.c.bf16 %v826, %v824
      %v853 = vpack.c.bf16 %v827, %v825
      %v854 = vpack.c.bf16 %v830, %v828
      %v855 = vpack.c.bf16 %v831, %v829
      %v856 = vpack.c.bf16 %v834, %v832
      %v857 = vpack.c.bf16 %v835, %v833
      %v858 = vpack.c.bf16 %v838, %v836
      %v859 = vpack.c.bf16 %v839, %v837
      %v860 = vpack.c.bf16 %v842, %v840
      %v861 = vpack.c.bf16 %v843, %v841
      %v862 = vpack.c.bf16 %v846, %v844
      %v863 = vpack.c.bf16 %v847, %v845
      %v864 = vld [vmem:[%s2] sm:$0xf]
      %v865 = vld [vmem:[%s2 + $0x4] sm:$0xf]
      %v866 = vld [vmem:[%s2 + $0x8] sm:$0xf]
      %v867 = vld [vmem:[%s2 + $0xc] sm:$0xf]
      %v868 = vld [vmem:[%s2 + $0x10] sm:$0xf]
      %v869 = vld [vmem:[%s2 + $0x14] sm:$0xf]
      %v870 = vld [vmem:[%s2 + $0x18] sm:$0xf]
      %v871 = vld [vmem:[%s2 + $0x1c] sm:$0xf]
      %v872 = vld [vmem:[%s3] sm:$0xff]
      %v873 = vld [vmem:[%s3 + $0x8] sm:$0xff]
      %v874 = vld [vmem:[%s3 + $0x10] sm:$0xff]
      %v875 = vld [vmem:[%s3 + $0x18] sm:$0xff]
      %v876 = vld [vmem:[%s3 + $0x20] sm:$0xff]
      %v877 = vld [vmem:[%s3 + $0x28] sm:$0xff]
      %v878 = vld [vmem:[%s3 + $0x30] sm:$0xff]
      %v879 = vld [vmem:[%s3 + $0x38] sm:$0xff]
      %881 = vset.pattern.permute.xlu0 0
      %882 = vperm.xlu0 %881, %v872
      %v883 = vpop.permute.xlu0 %882
      %886 = vset.pattern.permute.xlu0 0
      %887 = vperm.xlu0 %886, %v873
      %v888 = vpop.permute.xlu0 %887
      %891 = vset.pattern.permute.xlu0 0
      %892 = vperm.xlu0 %891, %v874
      %v893 = vpop.permute.xlu0 %892
      %896 = vset.pattern.permute.xlu0 0
      %897 = vperm.xlu0 %896, %v875
      %v898 = vpop.permute.xlu0 %897
      %901 = vset.pattern.permute.xlu0 0
      %902 = vperm.xlu0 %901, %v876
      %v903 = vpop.permute.xlu0 %902
      %906 = vset.pattern.permute.xlu0 0
      %907 = vperm.xlu0 %906, %v877
      %v908 = vpop.permute.xlu0 %907
      %911 = vset.pattern.permute.xlu0 0
      %912 = vperm.xlu0 %911, %v878
      %v913 = vpop.permute.xlu0 %912
      %916 = vset.pattern.permute.xlu0 0
      %917 = vperm.xlu0 %916, %v879
      %v918 = vpop.permute.xlu0 %917
      %v928 = vunpack.c.l.b16 %v864
      %v929 = vunpack.c.l.b16 %v865
      %v930 = vunpack.c.l.b16 %v866
      %v931 = vunpack.c.l.b16 %v867
      %v932 = vunpack.c.l.b16 %v868
      %v933 = vunpack.c.l.b16 %v869
      %v934 = vunpack.c.l.b16 %v870
      %v935 = vunpack.c.l.b16 %v871
      %v936 = vpack.c.b16 %v929, %v928
      %v937 = vpack.c.b16 %v931, %v930
      %v938 = vpack.c.b16 %v933, %v932
      %v939 = vpack.c.b16 %v935, %v934
      %944 = vmatprep.subr.bf16.mxu0 %v849
      %945 = vmatpush1.bf16.msra.mxu0 %v848
      %946 = vmatprep.subr.bf16.mxu0 %v851
      %947 = vmatpush1.bf16.msra.mxu0 %v850
      %948 = vmatprep.subr.bf16.mxu0 %v853
      %949 = vmatpush1.bf16.msra.mxu0 %v852
      %950 = vmatprep.subr.bf16.mxu0 %v855
      %951 = vmatpush1.bf16.msra.mxu0 %v854
      %952 = vmatprep.subr.bf16.mxu0 %v857
      %953 = vmatpush1.bf16.msra.mxu0 %v856
      %954 = vmatprep.subr.bf16.mxu0 %v859
      %955 = vmatpush1.bf16.msra.mxu0 %v858
      %956 = vmatprep.subr.bf16.mxu0 %v861
      %957 = vmatpush1.bf16.msra.mxu0 %v860
      %958 = vmatprep.subr.bf16.mxu0 %v863
      %959 = vmatpush1.bf16.msra.mxu0 %v862
      %960 = vmatprep.subr.bf16.mxu0 0
      %961 = vmatpush1.bf16.msra.mxu0 0
      %962 = vmatprep.subr.bf16.mxu0 0
      %963 = vmatpush1.bf16.msra.mxu0 0
      %964 = vmatprep.subr.bf16.mxu0 0
      %965 = vmatpush1.bf16.msra.mxu0 0
      %966 = vmatprep.subr.bf16.mxu0 0
      %967 = vmatpush1.bf16.msra.mxu0 0
      %968 = vmatprep.subr.bf16.mxu0 0
      %969 = vmatpush1.bf16.msra.mxu0 0
      %970 = vmatprep.subr.bf16.mxu0 0
      %971 = vmatpush1.bf16.msra.mxu0 0
      %972 = vmatprep.subr.bf16.mxu0 0
      %973 = vmatpush1.bf16.msra.mxu0 0
      %974 = vmatprep.subr.bf16.mxu0 0
      %975 = vmatpush1.bf16.msra.mxu0 0
      %976 = vmatprep.mubr.bf16.mxu0 0
      %977 = vmatmul.mubr.bf16.gmra.mrb[0].mxu0 %v936
      %v978 = vpop.f32.mrb[0].mxu0
      %v979 = vadd.f32 %v883, %v978
      %v980 = vpop.f32.mrb[0].mxu0
      %v981 = vadd.f32 %v883, %v980
      %v982 = vpop.f32.mrb[0].mxu0
      %v983 = vadd.f32 %v888, %v982
      %v984 = vpop.f32.mrb[0].mxu0
      %v985 = vadd.f32 %v888, %v984
      %986 = vmatprep.mubr.bf16.mxu0 0
      %987 = vmatmul.mubr.bf16.gmra.mrb[0].mxu0 %v937
      %v988 = vpop.f32.mrb[0].mxu0
      %v989 = vadd.f32 %v893, %v988
      %v990 = vpop.f32.mrb[0].mxu0
      %v991 = vadd.f32 %v893, %v990
      %v992 = vpop.f32.mrb[0].mxu0
      %v993 = vadd.f32 %v898, %v992
      %v994 = vpop.f32.mrb[0].mxu0
      %v995 = vadd.f32 %v898, %v994
      %996 = vmatprep.mubr.bf16.mxu0 0
      %997 = vmatmul.mubr.bf16.gmra.mrb[0].mxu0 %v938
      %v998 = vpop.f32.mrb[0].mxu0
      %v999 = vadd.f32 %v903, %v998
      %v1000 = vpop.f32.mrb[0].mxu0
      %v1001 = vadd.f32 %v903, %v1000
      %v1002 = vpop.f32.mrb[0].mxu0
      %v1003 = vadd.f32 %v908, %v1002
      %v1004 = vpop.f32.mrb[0].mxu0
      %v1005 = vadd.f32 %v908, %v1004
      %1006 = vmatprep.mubr.bf16.mxu0 0
      %1007 = vmatmul.mubr.bf16.gmra.mrb[0].mxu0 %v939
      %v1008 = vpop.f32.mrb[0].mxu0
      %v1009 = vadd.f32 %v913, %v1008
      %v1010 = vpop.f32.mrb[0].mxu0
      %v1011 = vadd.f32 %v913, %v1010
      %v1012 = vpop.f32.mrb[0].mxu0
      %v1013 = vadd.f32 %v918, %v1012
      %v1014 = vpop.f32.mrb[0].mxu0
      %v1015 = vadd.f32 %v918, %v1014
      %1016 = vdwg.mxu0
      %v1017 = vpack.c.bf16 %v983, %v979
      %v1018 = vpack.c.bf16 %v985, %v981
      %v1019 = vpack.c.bf16 %v993, %v989
      %v1020 = vpack.c.bf16 %v995, %v991
      %v1021 = vpack.c.bf16 %v1003, %v999
      %v1022 = vpack.c.bf16 %v1005, %v1001
      %v1023 = vpack.c.bf16 %v1013, %v1009
      %v1024 = vpack.c.bf16 %v1015, %v1011
      %v1025 = vld [vmem:[#allocation2] sm:$0xff]
      %v1026 = vld [vmem:[#allocation2 + $0x8] sm:$0xff]
      %v1027 = vld [vmem:[#allocation2 + $0x10] sm:$0xff]
      %v1028 = vld [vmem:[#allocation2 + $0x18] sm:$0xff]
      %v1029 = vld [vmem:[#allocation2 + $0x20] sm:$0xff]
      %v1030 = vld [vmem:[#allocation2 + $0x28] sm:$0xff]
      %v1031 = vld [vmem:[#allocation2 + $0x30] sm:$0xff]
      %v1032 = vld [vmem:[#allocation2 + $0x38] sm:$0xff]
      %1033 = vxpose.xlu0.c.b16.start [1/8] %v1017, 128
      %1034 = vxpose.xlu0.c.b16.cont [2/8] %v1019, 128
      %1035 = vxpose.xlu0.c.b16.cont [3/8] %v1021, 128
      %1036 = vxpose.xlu0.c.b16.cont [4/8] %v1023, 128
      %1037 = vxpose.xlu0.c.b16.cont [5/8] 0, 128
      %1038 = vxpose.xlu0.c.b16.cont [6/8] 0, 128
      %1039 = vxpose.xlu0.c.b16.cont [7/8] 0, 128
      %1040 = vxpose.xlu0.c.b16.end [8/8] 0, 128
      %v1041 = vpop.trf.xlu0
      %v1042 = vpop.trf.xlu0
      %v1043 = vpop.trf.xlu0
      %v1044 = vpop.trf.xlu0
      %v1045 = vpop.trf.xlu0
      %v1046 = vpop.trf.xlu0
      %v1047 = vpop.trf.xlu0
      %v1048 = vpop.trf.xlu0
      %1049 = vxpose.xlu0.c.b16.start [1/8] %v1018, 128
      %1050 = vxpose.xlu0.c.b16.cont [2/8] %v1020, 128
      %1051 = vxpose.xlu0.c.b16.cont [3/8] %v1022, 128
      %1052 = vxpose.xlu0.c.b16.cont [4/8] %v1024, 128
      %1053 = vxpose.xlu0.c.b16.cont [5/8] 0, 128
      %1054 = vxpose.xlu0.c.b16.cont [6/8] 0, 128
      %1055 = vxpose.xlu0.c.b16.cont [7/8] 0, 128
      %1056 = vxpose.xlu0.c.b16.end [8/8] 0, 128
      %v1057 = vpop.trf.xlu0
      %v1058 = vpop.trf.xlu0
      %v1059 = vpop.trf.xlu0
      %v1060 = vpop.trf.xlu0
      %v1061 = vpop.trf.xlu0
      %v1062 = vpop.trf.xlu0
      %v1063 = vpop.trf.xlu0
      %v1064 = vpop.trf.xlu0
      %vm1065 = vcmask 523264
      %v1067 = vsel %vm1065, %v1041, 0
      %v1070 = vsel %vm1065, %v1042, 0
      %v1073 = vsel %vm1065, %v1043, 0
      %v1076 = vsel %vm1065, %v1044, 0
      %v1079 = vsel %vm1065, %v1045, 0
      %v1082 = vsel %vm1065, %v1046, 0
      %v1085 = vsel %vm1065, %v1047, 0
      %v1088 = vsel %vm1065, %v1048, 0
      %v1091 = vsel %vm1065, %v1057, 0
      %v1094 = vsel %vm1065, %v1058, 0
      %v1097 = vsel %vm1065, %v1059, 0
      %v1100 = vsel %vm1065, %v1060, 0
      %v1103 = vsel %vm1065, %v1061, 0
      %v1106 = vsel %vm1065, %v1062, 0
      %v1109 = vsel %vm1065, %v1063, 0
      %v1112 = vsel %vm1065, %v1064, 0
      %1114 = vmatprep.subr.bf16.mxu0 0
      %1115 = vmatpush1.bf16.msra.mxu0 %v1025
      %1116 = vmatprep.subr.bf16.mxu0 0
      %1117 = vmatpush1.bf16.msra.mxu0 %v1026
      %1118 = vmatprep.subr.bf16.mxu0 0
      %1119 = vmatpush1.bf16.msra.mxu0 %v1027
      %1120 = vmatprep.subr.bf16.mxu0 0
      %1121 = vmatpush1.bf16.msra.mxu0 %v1028
      %1122 = vmatprep.subr.bf16.mxu0 0
      %1123 = vmatpush1.bf16.msra.mxu0 0
      %1124 = vmatprep.subr.bf16.mxu0 0
      %1125 = vmatpush1.bf16.msra.mxu0 0
      %1126 = vmatprep.subr.bf16.mxu0 0
      %1127 = vmatpush1.bf16.msra.mxu0 0
      %1128 = vmatprep.subr.bf16.mxu0 0
      %1129 = vmatpush1.bf16.msra.mxu0 0
      %1130 = vmatprep.subr.bf16.mxu0 0
      %1131 = vmatpush1.bf16.msra.mxu0 0
      %1132 = vmatprep.subr.bf16.mxu0 0
      %1133 = vmatpush1.bf16.msra.mxu0 0
      %1134 = vmatprep.subr.bf16.mxu0 0
      %1135 = vmatpush1.bf16.msra.mxu0 0
      %1136 = vmatprep.subr.bf16.mxu0 0
      %1137 = vmatpush1.bf16.msra.mxu0 0
      %1138 = vmatprep.subr.bf16.mxu0 0
      %1139 = vmatpush1.bf16.msra.mxu0 0
      %1140 = vmatprep.subr.bf16.mxu0 0
      %1141 = vmatpush1.bf16.msra.mxu0 0
      %1142 = vmatprep.subr.bf16.mxu0 0
      %1143 = vmatpush1.bf16.msra.mxu0 0
      %1144 = vmatprep.subr.bf16.mxu0 0
      %1145 = vmatpush1.bf16.msra.mxu0 0
      %1146 = vmatprep.mubr.bf16.mxu0 0
      %1147 = vmatmul.mubr.bf16.gmra.mrb[0].mxu0 %v1067
      %v1148 = vpop.f32.mrb[0].mxu0
      %v1149 = vadd.f32 0.0, %v1148
      %v1150 = vpop.f32.mrb[0].mxu0
      %v1151 = vpop.f32.mrb[0].mxu0
      %v1152 = vadd.f32 0.0, %v1151
      %v1153 = vpop.f32.mrb[0].mxu0
      %1154 = vmatprep.mubr.bf16.mxu0 0
      %1155 = vmatmul.mubr.bf16.gmra.mrb[0].mxu0 %v1070
      %v1156 = vpop.f32.mrb[0].mxu0
      %v1157 = vadd.f32 0.0, %v1156
      %v1158 = vpop.f32.mrb[0].mxu0
      %v1159 = vpop.f32.mrb[0].mxu0
      %v1160 = vadd.f32 0.0, %v1159
      %v1161 = vpop.f32.mrb[0].mxu0
      %1162 = vmatprep.mubr.bf16.mxu0 0
      %1163 = vmatmul.mubr.bf16.gmra.mrb[0].mxu0 %v1073
      %v1164 = vpop.f32.mrb[0].mxu0
      %v1165 = vadd.f32 0.0, %v1164
      %v1166 = vpop.f32.mrb[0].mxu0
      %v1167 = vpop.f32.mrb[0].mxu0
      %v1168 = vadd.f32 0.0, %v1167
      %v1169 = vpop.f32.mrb[0].mxu0
      %1170 = vmatprep.mubr.bf16.mxu0 0
      %1171 = vmatmul.mubr.bf16.gmra.mrb[0].mxu0 %v1076
      %v1172 = vpop.f32.mrb[0].mxu0
      %v1173 = vadd.f32 0.0, %v1172
      %v1174 = vpop.f32.mrb[0].mxu0
      %v1175 = vpop.f32.mrb[0].mxu0
      %v1176 = vadd.f32 0.0, %v1175
      %v1177 = vpop.f32.mrb[0].mxu0
      %1178 = vmatprep.mubr.bf16.mxu0 0
      %1179 = vmatmul.mubr.bf16.gmra.mrb[0].mxu0 %v1079
      %v1180 = vpop.f32.mrb[0].mxu0
      %v1181 = vadd.f32 0.0, %v1180
      %v1182 = vpop.f32.mrb[0].mxu0
      %v1183 = vpop.f32.mrb[0].mxu0
      %v1184 = vadd.f32 0.0, %v1183
      %v1185 = vpop.f32.mrb[0].mxu0
      %1186 = vmatprep.mubr.bf16.mxu0 0
      %1187 = vmatmul.mubr.bf16.gmra.mrb[0].mxu0 %v1082
      %v1188 = vpop.f32.mrb[0].mxu0
      %v1189 = vadd.f32 0.0, %v1188
      %v1190 = vpop.f32.mrb[0].mxu0
      %v1191 = vpop.f32.mrb[0].mxu0
      %v1192 = vadd.f32 0.0, %v1191
      %v1193 = vpop.f32.mrb[0].mxu0
      %1194 = vmatprep.mubr.bf16.mxu0 0
      %1195 = vmatmul.mubr.bf16.gmra.mrb[0].mxu0 %v1085
      %v1196 = vpop.f32.mrb[0].mxu0
      %v1197 = vadd.f32 0.0, %v1196
      %v1198 = vpop.f32.mrb[0].mxu0
      %v1199 = vpop.f32.mrb[0].mxu0
      %v1200 = vadd.f32 0.0, %v1199
      %v1201 = vpop.f32.mrb[0].mxu0
      %1202 = vmatprep.mubr.bf16.mxu0 0
      %1203 = vmatmul.mubr.bf16.gmra.mrb[0].mxu0 %v1088
      %v1204 = vpop.f32.mrb[0].mxu0
      %v1205 = vadd.f32 0.0, %v1204
      %v1206 = vpop.f32.mrb[0].mxu0
      %v1207 = vpop.f32.mrb[0].mxu0
      %v1208 = vadd.f32 0.0, %v1207
      %v1209 = vpop.f32.mrb[0].mxu0
      %1210 = vmatprep.mubr.bf16.mxu0 0
      %1211 = vmatmul.mubr.bf16.gmra.mrb[0].mxu0 %v1091
      %v1212 = vpop.f32.mrb[0].mxu0
      %v1213 = vadd.f32 0.0, %v1212
      %v1214 = vpop.f32.mrb[0].mxu0
      %v1215 = vpop.f32.mrb[0].mxu0
      %v1216 = vadd.f32 0.0, %v1215
      %v1217 = vpop.f32.mrb[0].mxu0
      %1218 = vmatprep.mubr.bf16.mxu0 0
      %1219 = vmatmul.mubr.bf16.gmra.mrb[0].mxu0 %v1094
      %v1220 = vpop.f32.mrb[0].mxu0
      %v1221 = vadd.f32 0.0, %v1220
      %v1222 = vpop.f32.mrb[0].mxu0
      %v1223 = vpop.f32.mrb[0].mxu0
      %v1224 = vadd.f32 0.0, %v1223
      %v1225 = vpop.f32.mrb[0].mxu0
      %1226 = vmatprep.mubr.bf16.mxu0 0
      %1227 = vmatmul.mubr.bf16.gmra.mrb[0].mxu0 %v1097
      %v1228 = vpop.f32.mrb[0].mxu0
      %v1229 = vadd.f32 0.0, %v1228
      %v1230 = vpop.f32.mrb[0].mxu0
      %v1231 = vpop.f32.mrb[0].mxu0
      %v1232 = vadd.f32 0.0, %v1231
      %v1233 = vpop.f32.mrb[0].mxu0
      %1234 = vmatprep.mubr.bf16.mxu0 0
      %1235 = vmatmul.mubr.bf16.gmra.mrb[0].mxu0 %v1100
      %v1236 = vpop.f32.mrb[0].mxu0
      %v1237 = vadd.f32 0.0, %v1236
      %v1238 = vpop.f32.mrb[0].mxu0
      %v1239 = vpop.f32.mrb[0].mxu0
      %v1240 = vadd.f32 0.0, %v1239
      %v1241 = vpop.f32.mrb[0].mxu0
      %1242 = vmatprep.mubr.bf16.mxu0 0
      %1243 = vmatmul.mubr.bf16.gmra.mrb[0].mxu0 %v1103
      %v1244 = vpop.f32.mrb[0].mxu0
      %v1245 = vadd.f32 0.0, %v1244
      %v1246 = vpop.f32.mrb[0].mxu0
      %v1247 = vpop.f32.mrb[0].mxu0
      %v1248 = vadd.f32 0.0, %v1247
      %v1249 = vpop.f32.mrb[0].mxu0
      %1250 = vmatprep.mubr.bf16.mxu0 0
      %1251 = vmatmul.mubr.bf16.gmra.mrb[0].mxu0 %v1106
      %v1252 = vpop.f32.mrb[0].mxu0
      %v1253 = vadd.f32 0.0, %v1252
      %v1254 = vpop.f32.mrb[0].mxu0
      %v1255 = vpop.f32.mrb[0].mxu0
      %v1256 = vadd.f32 0.0, %v1255
      %v1257 = vpop.f32.mrb[0].mxu0
      %1258 = vmatprep.mubr.bf16.mxu0 0
      %1259 = vmatmul.mubr.bf16.gmra.mrb[0].mxu0 %v1109
      %v1260 = vpop.f32.mrb[0].mxu0
      %v1261 = vadd.f32 0.0, %v1260
      %v1262 = vpop.f32.mrb[0].mxu0
      %v1263 = vpop.f32.mrb[0].mxu0
      %v1264 = vadd.f32 0.0, %v1263
      %v1265 = vpop.f32.mrb[0].mxu0
      %1266 = vmatprep.mubr.bf16.mxu0 0
      %1267 = vmatmul.mubr.bf16.gmra.mrb[0].mxu0 %v1112
      %v1268 = vpop.f32.mrb[0].mxu0
      %v1269 = vadd.f32 0.0, %v1268
      %v1270 = vpop.f32.mrb[0].mxu0
      %v1271 = vpop.f32.mrb[0].mxu0
      %v1272 = vadd.f32 0.0, %v1271
      %v1273 = vpop.f32.mrb[0].mxu0
      %1274 = vdwg.mxu0
      %1275 = vmax.xlane.f32.xlu0 %v1149
      %v1276 = vpop.xlane.xlu0 %1275
      %1277 = vmax.xlane.f32.xlu0 %v1152
      %v1278 = vpop.xlane.xlu0 %1277
      %1279 = vmax.xlane.f32.xlu0 %v1157
      %v1280 = vpop.xlane.xlu0 %1279
      %1281 = vmax.xlane.f32.xlu0 %v1160
      %v1282 = vpop.xlane.xlu0 %1281
      %1283 = vmax.xlane.f32.xlu0 %v1165
      %v1284 = vpop.xlane.xlu0 %1283
      %1285 = vmax.xlane.f32.xlu0 %v1168
      %v1286 = vpop.xlane.xlu0 %1285
      %1287 = vmax.xlane.f32.xlu0 %v1173
      %v1288 = vpop.xlane.xlu0 %1287
      %1289 = vmax.xlane.f32.xlu0 %v1176
      %v1290 = vpop.xlane.xlu0 %1289
      %1291 = vmax.xlane.f32.xlu0 %v1181
      %v1292 = vpop.xlane.xlu0 %1291
      %1293 = vmax.xlane.f32.xlu0 %v1184
      %v1294 = vpop.xlane.xlu0 %1293
      %1295 = vmax.xlane.f32.xlu0 %v1189
      %v1296 = vpop.xlane.xlu0 %1295
      %1297 = vmax.xlane.f32.xlu0 %v1192
      %v1298 = vpop.xlane.xlu0 %1297
      %1299 = vmax.xlane.f32.xlu0 %v1197
      %v1300 = vpop.xlane.xlu0 %1299
      %1301 = vmax.xlane.f32.xlu0 %v1200
      %v1302 = vpop.xlane.xlu0 %1301
      %1303 = vmax.xlane.f32.xlu0 %v1205
      %v1304 = vpop.xlane.xlu0 %1303
      %1305 = vmax.xlane.f32.xlu0 %v1208
      %v1306 = vpop.xlane.xlu0 %1305
      %1307 = vmax.xlane.f32.xlu0 %v1213
      %v1308 = vpop.xlane.xlu0 %1307
      %1309 = vmax.xlane.f32.xlu0 %v1216
      %v1310 = vpop.xlane.xlu0 %1309
      %1311 = vmax.xlane.f32.xlu0 %v1221
      %v1312 = vpop.xlane.xlu0 %1311
      %1313 = vmax.xlane.f32.xlu0 %v1224
      %v1314 = vpop.xlane.xlu0 %1313
      %1315 = vmax.xlane.f32.xlu0 %v1229
      %v1316 = vpop.xlane.xlu0 %1315
      %1317 = vmax.xlane.f32.xlu0 %v1232
      %v1318 = vpop.xlane.xlu0 %1317
      %1319 = vmax.xlane.f32.xlu0 %v1237
      %v1320 = vpop.xlane.xlu0 %1319
      %1321 = vmax.xlane.f32.xlu0 %v1240
      %v1322 = vpop.xlane.xlu0 %1321
      %1323 = vmax.xlane.f32.xlu0 %v1245
      %v1324 = vpop.xlane.xlu0 %1323
      %1325 = vmax.xlane.f32.xlu0 %v1248
      %v1326 = vpop.xlane.xlu0 %1325
      %1327 = vmax.xlane.f32.xlu0 %v1253
      %v1328 = vpop.xlane.xlu0 %1327
      %1329 = vmax.xlane.f32.xlu0 %v1256
      %v1330 = vpop.xlane.xlu0 %1329
      %1331 = vmax.xlane.f32.xlu0 %v1261
      %v1332 = vpop.xlane.xlu0 %1331
      %1333 = vmax.xlane.f32.xlu0 %v1264
      %v1334 = vpop.xlane.xlu0 %1333
      %1335 = vmax.xlane.f32.xlu0 %v1269
      %v1336 = vpop.xlane.xlu0 %1335
      %1337 = vmax.xlane.f32.xlu0 %v1272
      %v1338 = vpop.xlane.xlu0 %1337
      %v1339 = vsub.f32 %v1149, %v1276
      %v1340 = vsub.f32 %v1152, %v1278
      %v1341 = vsub.f32 %v1157, %v1280
      %v1342 = vsub.f32 %v1160, %v1282
      %v1343 = vsub.f32 %v1165, %v1284
      %v1344 = vsub.f32 %v1168, %v1286
      %v1345 = vsub.f32 %v1173, %v1288
      %v1346 = vsub.f32 %v1176, %v1290
      %v1347 = vsub.f32 %v1181, %v1292
      %v1348 = vsub.f32 %v1184, %v1294
      %v1349 = vsub.f32 %v1189, %v1296
      %v1350 = vsub.f32 %v1192, %v1298
      %v1351 = vsub.f32 %v1197, %v1300
      %v1352 = vsub.f32 %v1200, %v1302
      %v1353 = vsub.f32 %v1205, %v1304
      %v1354 = vsub.f32 %v1208, %v1306
      %v1355 = vsub.f32 %v1213, %v1308
      %v1356 = vsub.f32 %v1216, %v1310
      %v1357 = vsub.f32 %v1221, %v1312
      %v1358 = vsub.f32 %v1224, %v1314
      %v1359 = vsub.f32 %v1229, %v1316
      %v1360 = vsub.f32 %v1232, %v1318
      %v1361 = vsub.f32 %v1237, %v1320
      %v1362 = vsub.f32 %v1240, %v1322
      %v1363 = vsub.f32 %v1245, %v1324
      %v1364 = vsub.f32 %v1248, %v1326
      %v1365 = vsub.f32 %v1253, %v1328
      %v1366 = vsub.f32 %v1256, %v1330
      %v1367 = vsub.f32 %v1261, %v1332
      %v1368 = vsub.f32 %v1264, %v1334
      %v1369 = vsub.f32 %v1269, %v1336
      %v1370 = vsub.f32 %v1272, %v1338
      %v1371 = vmul.f32 %v1339, 1.442695
      %v1372 = vpow.pop %v1371
      %v1373 = vmul.f32 %v1340, 1.442695
      %v1374 = vpow.pop %v1373
      %v1375 = vmul.f32 %v1341, 1.442695
      %v1376 = vpow.pop %v1375
      %v1377 = vmul.f32 %v1342, 1.442695
      %v1378 = vpow.pop %v1377
      %v1379 = vmul.f32 %v1343, 1.442695
      %v1380 = vpow.pop %v1379
      %v1381 = vmul.f32 %v1344, 1.442695
      %v1382 = vpow.pop %v1381
      %v1383 = vmul.f32 %v1345, 1.442695
      %v1384 = vpow.pop %v1383
      %v1385 = vmul.f32 %v1346, 1.442695
      %v1386 = vpow.pop %v1385
      %v1387 = vmul.f32 %v1347, 1.442695
      %v1388 = vpow.pop %v1387
      %v1389 = vmul.f32 %v1348, 1.442695
      %v1390 = vpow.pop %v1389
      %v1391 = vmul.f32 %v1349, 1.442695
      %v1392 = vpow.pop %v1391
      %v1393 = vmul.f32 %v1350, 1.442695
      %v1394 = vpow.pop %v1393
      %v1395 = vmul.f32 %v1351, 1.442695
      %v1396 = vpow.pop %v1395
      %v1397 = vmul.f32 %v1352, 1.442695
      %v1398 = vpow.pop %v1397
      %v1399 = vmul.f32 %v1353, 1.442695
      %v1400 = vpow.pop %v1399
      %v1401 = vmul.f32 %v1354, 1.442695
      %v1402 = vpow.pop %v1401
      %v1403 = vmul.f32 %v1355, 1.442695
      %v1404 = vpow.pop %v1403
      %v1405 = vmul.f32 %v1356, 1.442695
      %v1406 = vpow.pop %v1405
      %v1407 = vmul.f32 %v1357, 1.442695
      %v1408 = vpow.pop %v1407
      %v1409 = vmul.f32 %v1358, 1.442695
      %v1410 = vpow.pop %v1409
      %v1411 = vmul.f32 %v1359, 1.442695
      %v1412 = vpow.pop %v1411
      %v1413 = vmul.f32 %v1360, 1.442695
      %v1414 = vpow.pop %v1413
      %v1415 = vmul.f32 %v1361, 1.442695
      %v1416 = vpow.pop %v1415
      %v1417 = vmul.f32 %v1362, 1.442695
      %v1418 = vpow.pop %v1417
      %v1419 = vmul.f32 %v1363, 1.442695
      %v1420 = vpow.pop %v1419
      %v1421 = vmul.f32 %v1364, 1.442695
      %v1422 = vpow.pop %v1421
      %v1423 = vmul.f32 %v1365, 1.442695
      %v1424 = vpow.pop %v1423
      %v1425 = vmul.f32 %v1366, 1.442695
      %v1426 = vpow.pop %v1425
      %v1427 = vmul.f32 %v1367, 1.442695
      %v1428 = vpow.pop %v1427
      %v1429 = vmul.f32 %v1368, 1.442695
      %v1430 = vpow.pop %v1429
      %v1431 = vmul.f32 %v1369, 1.442695
      %v1432 = vpow.pop %v1431
      %v1433 = vmul.f32 %v1370, 1.442695
      %v1434 = vpow.pop %v1433
      %v1435 = vpack.c.bf16 %v1374, %v1372
      %v1436 = vpack.c.bf16 %v1378, %v1376
      %v1437 = vpack.c.bf16 %v1382, %v1380
      %v1438 = vpack.c.bf16 %v1386, %v1384
      %v1439 = vpack.c.bf16 %v1390, %v1388
      %v1440 = vpack.c.bf16 %v1394, %v1392
      %v1441 = vpack.c.bf16 %v1398, %v1396
      %v1442 = vpack.c.bf16 %v1402, %v1400
      %v1443 = vpack.c.bf16 %v1406, %v1404
      %v1444 = vpack.c.bf16 %v1410, %v1408
      %v1445 = vpack.c.bf16 %v1414, %v1412
      %v1446 = vpack.c.bf16 %v1418, %v1416
      %v1447 = vpack.c.bf16 %v1422, %v1420
      %v1448 = vpack.c.bf16 %v1426, %v1424
      %v1449 = vpack.c.bf16 %v1430, %v1428
      %v1450 = vpack.c.bf16 %v1434, %v1432
      %1451 = vmatprep.subr.bf16.mxu0 0
      %1452 = vmatpush1.bf16.xpose.msra.mxu0 %v1435
      %1453 = vmatprep.subr.bf16.mxu0 0
      %1454 = vmatpush1.bf16.xpose.msra.mxu0 %v1436
      %1455 = vmatprep.subr.bf16.mxu0 0
      %1456 = vmatpush1.bf16.xpose.msra.mxu0 %v1437
      %1457 = vmatprep.subr.bf16.mxu0 0
      %1458 = vmatpush1.bf16.xpose.msra.mxu0 %v1438
      %1459 = vmatprep.subr.bf16.mxu0 0
      %1460 = vmatpush1.bf16.xpose.msra.mxu0 %v1439
      %1461 = vmatprep.subr.bf16.mxu0 0
      %1462 = vmatpush1.bf16.xpose.msra.mxu0 %v1440
      %1463 = vmatprep.subr.bf16.mxu0 0
      %1464 = vmatpush1.bf16.xpose.msra.mxu0 %v1441
      %1465 = vmatprep.subr.bf16.mxu0 0
      %1466 = vmatpush1.bf16.xpose.msra.mxu0 %v1442
      %1467 = vmatprep.subr.bf16.mxu0 0
      %1468 = vmatpush1.bf16.xpose.msra.mxu0 %v1443
      %1469 = vmatprep.subr.bf16.mxu0 0
      %1470 = vmatpush1.bf16.xpose.msra.mxu0 %v1444
      %1471 = vmatprep.subr.bf16.mxu0 0
      %1472 = vmatpush1.bf16.xpose.msra.mxu0 %v1445
      %1473 = vmatprep.subr.bf16.mxu0 0
      %1474 = vmatpush1.bf16.xpose.msra.mxu0 %v1446
      %1475 = vmatprep.subr.bf16.mxu0 0
      %1476 = vmatpush1.bf16.xpose.msra.mxu0 %v1447
      %1477 = vmatprep.subr.bf16.mxu0 0
      %1478 = vmatpush1.bf16.xpose.msra.mxu0 %v1448
      %1479 = vmatprep.subr.bf16.mxu0 0
      %1480 = vmatpush1.bf16.xpose.msra.mxu0 %v1449
      %1481 = vmatprep.subr.bf16.mxu0 0
      %1482 = vmatpush1.bf16.xpose.msra.mxu0 %v1450
      %1483 = vmatprep.mubr.bf16.mxu0 0
      %1484 = vmatmul.mubr.bf16.gmra.mrb[0].mxu0 %v1029
      %v1485 = vpop.f32.mrb[0].mxu0
      %v1486 = vadd.f32 0.0, %v1485
      %v1487 = vpop.f32.mrb[0].mxu0
      %v1488 = vadd.f32 0.0, %v1487
      %v1489 = vpop.f32.mrb[0].mxu0
      %v1490 = vadd.f32 0.0, %v1489
      %v1491 = vpop.f32.mrb[0].mxu0
      %v1492 = vadd.f32 0.0, %v1491
      %1493 = vmatprep.mubr.bf16.mxu0 0
      %1494 = vmatmul.mubr.bf16.gmra.mrb[0].mxu0 %v1030
      %v1495 = vpop.f32.mrb[0].mxu0
      %v1496 = vadd.f32 0.0, %v1495
      %v1497 = vpop.f32.mrb[0].mxu0
      %v1498 = vadd.f32 0.0, %v1497
      %v1499 = vpop.f32.mrb[0].mxu0
      %v1500 = vadd.f32 0.0, %v1499
      %v1501 = vpop.f32.mrb[0].mxu0
      %v1502 = vadd.f32 0.0, %v1501
      %1503 = vmatprep.mubr.bf16.mxu0 0
      %1504 = vmatmul.mubr.bf16.gmra.mrb[0].mxu0 %v1031
      %v1505 = vpop.f32.mrb[0].mxu0
      %v1506 = vadd.f32 0.0, %v1505
      %v1507 = vpop.f32.mrb[0].mxu0
      %v1508 = vadd.f32 0.0, %v1507
      %v1509 = vpop.f32.mrb[0].mxu0
      %v1510 = vadd.f32 0.0, %v1509
      %v1511 = vpop.f32.mrb[0].mxu0
      %v1512 = vadd.f32 0.0, %v1511
      %1513 = vmatprep.mubr.bf16.mxu0 0
      %1514 = vmatmul.mubr.bf16.gmra.mrb[0].mxu0 %v1032
      %v1515 = vpop.f32.mrb[0].mxu0
      %v1516 = vadd.f32 0.0, %v1515
      %v1517 = vpop.f32.mrb[0].mxu0
      %v1518 = vadd.f32 0.0, %v1517
      %v1519 = vpop.f32.mrb[0].mxu0
      %v1520 = vadd.f32 0.0, %v1519
      %v1521 = vpop.f32.mrb[0].mxu0
      %v1522 = vadd.f32 0.0, %v1521
      %1523 = vdwg.mxu0
      %1524 = vmatprep.subr.bf16.mxu0 0
      %1525 = vmatpush1.bf16.xpose.msra.mxu0 %v1435
      %1526 = vmatprep.subr.bf16.mxu0 0
      %1527 = vmatpush1.bf16.xpose.msra.mxu0 %v1436
      %1528 = vmatprep.subr.bf16.mxu0 0
      %1529 = vmatpush1.bf16.xpose.msra.mxu0 %v1437
      %1530 = vmatprep.subr.bf16.mxu0 0
      %1531 = vmatpush1.bf16.xpose.msra.mxu0 %v1438
      %1532 = vmatprep.subr.bf16.mxu0 0
      %1533 = vmatpush1.bf16.xpose.msra.mxu0 %v1439
      %1534 = vmatprep.subr.bf16.mxu0 0
      %1535 = vmatpush1.bf16.xpose.msra.mxu0 %v1440
      %1536 = vmatprep.subr.bf16.mxu0 0
      %1537 = vmatpush1.bf16.xpose.msra.mxu0 %v1441
      %1538 = vmatprep.subr.bf16.mxu0 0
      %1539 = vmatpush1.bf16.xpose.msra.mxu0 %v1442
      %1540 = vmatprep.subr.bf16.mxu0 0
      %1541 = vmatpush1.bf16.xpose.msra.mxu0 %v1443
      %1542 = vmatprep.subr.bf16.mxu0 0
      %1543 = vmatpush1.bf16.xpose.msra.mxu0 %v1444
      %1544 = vmatprep.subr.bf16.mxu0 0
      %1545 = vmatpush1.bf16.xpose.msra.mxu0 %v1445
      %1546 = vmatprep.subr.bf16.mxu0 0
      %1547 = vmatpush1.bf16.xpose.msra.mxu0 %v1446
      %1548 = vmatprep.subr.bf16.mxu0 0
      %1549 = vmatpush1.bf16.xpose.msra.mxu0 %v1447
      %1550 = vmatprep.subr.bf16.mxu0 0
      %1551 = vmatpush1.bf16.xpose.msra.mxu0 %v1448
      %1552 = vmatprep.subr.bf16.mxu0 0
      %1553 = vmatpush1.bf16.xpose.msra.mxu0 %v1449
      %1554 = vmatprep.subr.bf16.mxu0 0
      %1555 = vmatpush1.bf16.xpose.msra.mxu0 %v1450
      %1556 = vmatprep.mubr.bf16.mxu0 0
      %1557 = vmatmul.mubr.bf16.gmra.mrb[0].mxu0 1065369472
      %v1558 = vpop.f32.mrb[0].mxu0
      %v1559 = vadd.f32 0.0, %v1558
      %v1560 = vpop.f32.mrb[0].mxu0
      %v1561 = vadd.f32 0.0, %v1560
      %v1562 = vpop.f32.mrb[0].mxu0
      %v1563 = vpop.f32.mrb[0].mxu0
      %1564 = vdwg.mxu0
      %v1565 = vrcp.pop %v1559
      %v1566 = vrcp.pop %v1561
      %v1567 = vlaneseq
      %v1568 = vshrl.u32 %v1567, 7
      %v1569 = vsub.s32 0, %v1568
      %v1570 = vrot.slane %v1565, %v1569
      %v1571 = vlaneseq
      %v1572 = vshrl.u32 %v1571, 7
      %v1573 = vsub.s32 0, %v1572
      %v1574 = vrot.slane %v1566, %v1573
      %v1575 = vmul.f32 %v1486, %v1570
      %v1576 = vmul.f32 %v1488, %v1574
      %v1577 = vmul.f32 %v1490, %v1570
      %v1578 = vmul.f32 %v1492, %v1574
      %v1579 = vmul.f32 %v1496, %v1570
      %v1580 = vmul.f32 %v1498, %v1574
      %v1581 = vmul.f32 %v1500, %v1570
      %v1582 = vmul.f32 %v1502, %v1574
      %v1583 = vmul.f32 %v1506, %v1570
      %v1584 = vmul.f32 %v1508, %v1574
      %v1585 = vmul.f32 %v1510, %v1570
      %v1586 = vmul.f32 %v1512, %v1574
      %v1587 = vmul.f32 %v1516, %v1570
      %v1588 = vmul.f32 %v1518, %v1574
      %v1589 = vmul.f32 %v1520, %v1570
      %v1590 = vmul.f32 %v1522, %v1574
      %v1591 = vld [vmem:[%s6] sm:$0xf]
      %v1592 = vld [vmem:[%s6 + $0x4] sm:$0xf]
      %v1593 = vld [vmem:[%s6 + $0x8] sm:$0xf]
      %v1594 = vld [vmem:[%s6 + $0xc] sm:$0xf]
      %v1595 = vld [vmem:[%s6 + $0x10] sm:$0xf]
      %v1596 = vld [vmem:[%s6 + $0x14] sm:$0xf]
      %v1597 = vld [vmem:[%s6 + $0x18] sm:$0xf]
      %v1598 = vld [vmem:[%s6 + $0x1c] sm:$0xf]
      %v1599 = vld [vmem:[%s6 + $0x20] sm:$0xf]
      %v1600 = vld [vmem:[%s6 + $0x24] sm:$0xf]
      %v1601 = vld [vmem:[%s6 + $0x28] sm:$0xf]
      %v1602 = vld [vmem:[%s6 + $0x2c] sm:$0xf]
      %v1603 = vld [vmem:[%s6 + $0x30] sm:$0xf]
      %v1604 = vld [vmem:[%s6 + $0x34] sm:$0xf]
      %v1605 = vld [vmem:[%s6 + $0x38] sm:$0xf]
      %v1606 = vld [vmem:[%s6 + $0x3c] sm:$0xf]
      %v1607 = vpack.c.bf16 %v1577, %v1575
      %v1608 = vpack.c.bf16 %v1578, %v1576
      %v1609 = vpack.c.bf16 %v1581, %v1579
      %v1610 = vpack.c.bf16 %v1582, %v1580
      %v1611 = vpack.c.bf16 %v1585, %v1583
      %v1612 = vpack.c.bf16 %v1586, %v1584
      %v1613 = vpack.c.bf16 %v1589, %v1587
      %v1614 = vpack.c.bf16 %v1590, %v1588
      %v1615 = vld [vmem:[%s7] sm:$0xff]
      %v1616 = vld [vmem:[%s7 + $0x8] sm:$0xff]
      %v1617 = vld [vmem:[%s7 + $0x10] sm:$0xff]
      %v1618 = vld [vmem:[%s7 + $0x18] sm:$0xff]
      %v1619 = vld [vmem:[%s7 + $0x20] sm:$0xff]
      %v1620 = vld [vmem:[%s7 + $0x28] sm:$0xff]
      %v1621 = vld [vmem:[%s7 + $0x30] sm:$0xff]
      %v1622 = vld [vmem:[%s7 + $0x38] sm:$0xff]
      %v1623 = vld [vmem:[%s7 + $0x40] sm:$0xff]
      %v1624 = vld [vmem:[%s7 + $0x48] sm:$0xff]
      %v1625 = vld [vmem:[%s7 + $0x50] sm:$0xff]
      %v1626 = vld [vmem:[%s7 + $0x58] sm:$0xff]
      %v1627 = vld [vmem:[%s7 + $0x60] sm:$0xff]
      %v1628 = vld [vmem:[%s7 + $0x68] sm:$0xff]
      %v1629 = vld [vmem:[%s7 + $0x70] sm:$0xff]
      %v1630 = vld [vmem:[%s7 + $0x78] sm:$0xff]
      %1632 = vset.pattern.permute.xlu0 0
      %1633 = vperm.xlu0 %1632, %v1615
      %v1634 = vpop.permute.xlu0 %1633
      %1637 = vset.pattern.permute.xlu0 0
      %1638 = vperm.xlu0 %1637, %v1616
      %v1639 = vpop.permute.xlu0 %1638
      %1642 = vset.pattern.permute.xlu0 0
      %1643 = vperm.xlu0 %1642, %v1617
      %v1644 = vpop.permute.xlu0 %1643
      %1647 = vset.pattern.permute.xlu0 0
      %1648 = vperm.xlu0 %1647, %v1618
      %v1649 = vpop.permute.xlu0 %1648
      %1652 = vset.pattern.permute.xlu0 0
      %1653 = vperm.xlu0 %1652, %v1619
      %v1654 = vpop.permute.xlu0 %1653
      %1657 = vset.pattern.permute.xlu0 0
      %1658 = vperm.xlu0 %1657, %v1620
      %v1659 = vpop.permute.xlu0 %1658
      %1662 = vset.pattern.permute.xlu0 0
      %1663 = vperm.xlu0 %1662, %v1621
      %v1664 = vpop.permute.xlu0 %1663
      %1667 = vset.pattern.permute.xlu0 0
      %1668 = vperm.xlu0 %1667, %v1622
      %v1669 = vpop.permute.xlu0 %1668
      %1672 = vset.pattern.permute.xlu0 0
      %1673 = vperm.xlu0 %1672, %v1623
      %v1674 = vpop.permute.xlu0 %1673
      %1677 = vset.pattern.permute.xlu0 0
      %1678 = vperm.xlu0 %1677, %v1624
      %v1679 = vpop.permute.xlu0 %1678
      %1682 = vset.pattern.permute.xlu0 0
      %1683 = vperm.xlu0 %1682, %v1625
      %v1684 = vpop.permute.xlu0 %1683
      %1687 = vset.pattern.permute.xlu0 0
      %1688 = vperm.xlu0 %1687, %v1626
      %v1689 = vpop.permute.xlu0 %1688
      %1692 = vset.pattern.permute.xlu0 0
      %1693 = vperm.xlu0 %1692, %v1627
      %v1694 = vpop.permute.xlu0 %1693
      %1697 = vset.pattern.permute.xlu0 0
      %1698 = vperm.xlu0 %1697, %v1628
      %v1699 = vpop.permute.xlu0 %1698
      %1702 = vset.pattern.permute.xlu0 0
      %1703 = vperm.xlu0 %1702, %v1629
      %v1704 = vpop.permute.xlu0 %1703
      %1707 = vset.pattern.permute.xlu0 0
      %1708 = vperm.xlu0 %1707, %v1630
      %v1709 = vpop.permute.xlu0 %1708
      %v1727 = vunpack.c.l.b16 %v1591
      %v1728 = vunpack.c.l.b16 %v1592
      %v1729 = vunpack.c.l.b16 %v1593
      %v1730 = vunpack.c.l.b16 %v1594
      %v1731 = vunpack.c.l.b16 %v1595
      %v1732 = vunpack.c.l.b16 %v1596
      %v1733 = vunpack.c.l.b16 %v1597
      %v1734 = vunpack.c.l.b16 %v1598
      %v1735 = vunpack.c.l.b16 %v1599
      %v1736 = vunpack.c.l.b16 %v1600
      %v1737 = vunpack.c.l.b16 %v1601
      %v1738 = vunpack.c.l.b16 %v1602
      %v1739 = vunpack.c.l.b16 %v1603
      %v1740 = vunpack.c.l.b16 %v1604
      %v1741 = vunpack.c.l.b16 %v1605
      %v1742 = vunpack.c.l.b16 %v1606
      %v1743 = vpack.c.b16 %v1728, %v1727
      %v1744 = vpack.c.b16 %v1730, %v1729
      %v1745 = vpack.c.b16 %v1732, %v1731
      %v1746 = vpack.c.b16 %v1734, %v1733
      %v1747 = vpack.c.b16 %v1736, %v1735
      %v1748 = vpack.c.b16 %v1738, %v1737
      %v1749 = vpack.c.b16 %v1740, %v1739
      %v1750 = vpack.c.b16 %v1742, %v1741
      %v1752 = vsel %vm1065, %v1743, 0
      %v1755 = vsel %vm1065, %v1744, 0
      %v1758 = vsel %vm1065, %v1745, 0
      %v1761 = vsel %vm1065, %v1746, 0
      %v1764 = vsel %vm1065, %v1747, 0
      %v1767 = vsel %vm1065, %v1748, 0
      %v1770 = vsel %vm1065, %v1749, 0
      %v1773 = vsel %vm1065, %v1750, 0
      %1775 = vmatprep.subr.bf16.mxu0 %v1608
      %1776 = vmatpush1.bf16.msra.mxu0 %v1607
      %1777 = vmatprep.subr.bf16.mxu0 %v1610
      %1778 = vmatpush1.bf16.msra.mxu0 %v1609
      %1779 = vmatprep.subr.bf16.mxu0 %v1612
      %1780 = vmatpush1.bf16.msra.mxu0 %v1611
      %1781 = vmatprep.subr.bf16.mxu0 %v1614
      %1782 = vmatpush1.bf16.msra.mxu0 %v1613
      %1783 = vmatprep.subr.bf16.mxu0 0
      %1784 = vmatpush1.bf16.msra.mxu0 0
      %1785 = vmatprep.subr.bf16.mxu0 0
      %1786 = vmatpush1.bf16.msra.mxu0 0
      %1787 = vmatprep.subr.bf16.mxu0 0
      %1788 = vmatpush1.bf16.msra.mxu0 0
      %1789 = vmatprep.subr.bf16.mxu0 0
      %1790 = vmatpush1.bf16.msra.mxu0 0
      %1791 = vmatprep.subr.bf16.mxu0 0
      %1792 = vmatpush1.bf16.msra.mxu0 0
      %1793 = vmatprep.subr.bf16.mxu0 0
      %1794 = vmatpush1.bf16.msra.mxu0 0
      %1795 = vmatprep.subr.bf16.mxu0 0
      %1796 = vmatpush1.bf16.msra.mxu0 0
      %1797 = vmatprep.subr.bf16.mxu0 0
      %1798 = vmatpush1.bf16.msra.mxu0 0
      %1799 = vmatprep.subr.bf16.mxu0 0
      %1800 = vmatpush1.bf16.msra.mxu0 0
      %1801 = vmatprep.subr.bf16.mxu0 0
      %1802 = vmatpush1.bf16.msra.mxu0 0
      %1803 = vmatprep.subr.bf16.mxu0 0
      %1804 = vmatpush1.bf16.msra.mxu0 0
      %1805 = vmatprep.subr.bf16.mxu0 0
      %1806 = vmatpush1.bf16.msra.mxu0 0
      %1807 = vmatprep.mubr.bf16.mxu0 0
      %1808 = vmatmul.mubr.bf16.gmra.mrb[0].mxu0 %v1752
      %v1809 = vpop.f32.mrb[0].mxu0
      %v1810 = vadd.f32 %v1634, %v1809
      %v1811 = vpop.f32.mrb[0].mxu0
      %v1812 = vadd.f32 %v1634, %v1811
      %v1813 = vpop.f32.mrb[0].mxu0
      %v1814 = vadd.f32 %v1639, %v1813
      %v1815 = vpop.f32.mrb[0].mxu0
      %v1816 = vadd.f32 %v1639, %v1815
      %1817 = vmatprep.mubr.bf16.mxu0 0
      %1818 = vmatmul.mubr.bf16.gmra.mrb[0].mxu0 %v1755
      %v1819 = vpop.f32.mrb[0].mxu0
      %v1820 = vadd.f32 %v1644, %v1819
      %v1821 = vpop.f32.mrb[0].mxu0
      %v1822 = vadd.f32 %v1644, %v1821
      %v1823 = vpop.f32.mrb[0].mxu0
      %v1824 = vadd.f32 %v1649, %v1823
      %v1825 = vpop.f32.mrb[0].mxu0
      %v1826 = vadd.f32 %v1649, %v1825
      %1827 = vmatprep.mubr.bf16.mxu0 0
      %1828 = vmatmul.mubr.bf16.gmra.mrb[0].mxu0 %v1758
      %v1829 = vpop.f32.mrb[0].mxu0
      %v1830 = vadd.f32 %v1654, %v1829
      %v1831 = vpop.f32.mrb[0].mxu0
      %v1832 = vadd.f32 %v1654, %v1831
      %v1833 = vpop.f32.mrb[0].mxu0
      %v1834 = vadd.f32 %v1659, %v1833
      %v1835 = vpop.f32.mrb[0].mxu0
      %v1836 = vadd.f32 %v1659, %v1835
      %1837 = vmatprep.mubr.bf16.mxu0 0
      %1838 = vmatmul.mubr.bf16.gmra.mrb[0].mxu0 %v1761
      %v1839 = vpop.f32.mrb[0].mxu0
      %v1840 = vadd.f32 %v1664, %v1839
      %v1841 = vpop.f32.mrb[0].mxu0
      %v1842 = vadd.f32 %v1664, %v1841
      %v1843 = vpop.f32.mrb[0].mxu0
      %v1844 = vadd.f32 %v1669, %v1843
      %v1845 = vpop.f32.mrb[0].mxu0
      %v1846 = vadd.f32 %v1669, %v1845
      %1847 = vmatprep.mubr.bf16.mxu0 0
      %1848 = vmatmul.mubr.bf16.gmra.mrb[0].mxu0 %v1764
      %v1849 = vpop.f32.mrb[0].mxu0
      %v1850 = vadd.f32 %v1674, %v1849
      %v1851 = vpop.f32.mrb[0].mxu0
      %v1852 = vadd.f32 %v1674, %v1851
      %v1853 = vpop.f32.mrb[0].mxu0
      %v1854 = vadd.f32 %v1679, %v1853
      %v1855 = vpop.f32.mrb[0].mxu0
      %v1856 = vadd.f32 %v1679, %v1855
      %1857 = vmatprep.mubr.bf16.mxu0 0
      %1858 = vmatmul.mubr.bf16.gmra.mrb[0].mxu0 %v1767
      %v1859 = vpop.f32.mrb[0].mxu0
      %v1860 = vadd.f32 %v1684, %v1859
      %v1861 = vpop.f32.mrb[0].mxu0
      %v1862 = vadd.f32 %v1684, %v1861
      %v1863 = vpop.f32.mrb[0].mxu0
      %v1864 = vadd.f32 %v1689, %v1863
      %v1865 = vpop.f32.mrb[0].mxu0
      %v1866 = vadd.f32 %v1689, %v1865
      %1867 = vmatprep.mubr.bf16.mxu0 0
      %1868 = vmatmul.mubr.bf16.gmra.mrb[0].mxu0 %v1770
      %v1869 = vpop.f32.mrb[0].mxu0
      %v1870 = vadd.f32 %v1694, %v1869
      %v1871 = vpop.f32.mrb[0].mxu0
      %v1872 = vadd.f32 %v1694, %v1871
      %v1873 = vpop.f32.mrb[0].mxu0
      %v1874 = vadd.f32 %v1699, %v1873
      %v1875 = vpop.f32.mrb[0].mxu0
      %v1876 = vadd.f32 %v1699, %v1875
      %1877 = vmatprep.mubr.bf16.mxu0 0
      %1878 = vmatmul.mubr.bf16.gmra.mrb[0].mxu0 %v1773
      %v1879 = vpop.f32.mrb[0].mxu0
      %v1880 = vadd.f32 %v1704, %v1879
      %v1881 = vpop.f32.mrb[0].mxu0
      %v1882 = vadd.f32 %v1704, %v1881
      %v1883 = vpop.f32.mrb[0].mxu0
      %v1884 = vadd.f32 %v1709, %v1883
      %v1885 = vpop.f32.mrb[0].mxu0
      %v1886 = vadd.f32 %v1709, %v1885
      %1887 = vdwg.mxu0
      %v1888 = vadd.f32 %v1810, %v816
      %v1889 = vadd.f32 %v1812, %v817
      %v1890 = vadd.f32 %v1814, %v818
      %v1891 = vadd.f32 %v1816, %v819
      %v1892 = vadd.f32 %v1820, %v820
      %v1893 = vadd.f32 %v1822, %v821
      %v1894 = vadd.f32 %v1824, %v822
      %v1895 = vadd.f32 %v1826, %v823
      %v1896 = vadd.f32 %v1830, %v824
      %v1897 = vadd.f32 %v1832, %v825
      %v1898 = vadd.f32 %v1834, %v826
      %v1899 = vadd.f32 %v1836, %v827
      %v1900 = vadd.f32 %v1840, %v828
      %v1901 = vadd.f32 %v1842, %v829
      %v1902 = vadd.f32 %v1844, %v830
      %v1903 = vadd.f32 %v1846, %v831
      %v1904 = vadd.f32 %v1850, %v832
      %v1905 = vadd.f32 %v1852, %v833
      %v1906 = vadd.f32 %v1854, %v834
      %v1907 = vadd.f32 %v1856, %v835
      %v1908 = vadd.f32 %v1860, %v836
      %v1909 = vadd.f32 %v1862, %v837
      %v1910 = vadd.f32 %v1864, %v838
      %v1911 = vadd.f32 %v1866, %v839
      %v1912 = vadd.f32 %v1870, %v840
      %v1913 = vadd.f32 %v1872, %v841
      %v1914 = vadd.f32 %v1874, %v842
      %v1915 = vadd.f32 %v1876, %v843
      %v1916 = vadd.f32 %v1880, %v844
      %v1917 = vadd.f32 %v1882, %v845
      %v1918 = vadd.f32 %v1884, %v846
      %v1919 = vadd.f32 %v1886, %v847
      %v1920 = vld [vmem:[%s8] sm:$0xf]
      %v1921 = vld [vmem:[%s8 + $0x4] sm:$0xf]
      %v1922 = vld [vmem:[%s8 + $0x8] sm:$0xf]
      %v1923 = vld [vmem:[%s8 + $0xc] sm:$0xf]
      %v1924 = vld [vmem:[%s8 + $0x10] sm:$0xf]
      %v1925 = vld [vmem:[%s8 + $0x14] sm:$0xf]
      %v1926 = vld [vmem:[%s8 + $0x18] sm:$0xf]
      %v1927 = vld [vmem:[%s8 + $0x1c] sm:$0xf]
      %v1928 = vld [vmem:[%s8 + $0x20] sm:$0xf]
      %v1929 = vld [vmem:[%s8 + $0x24] sm:$0xf]
      %v1930 = vld [vmem:[%s8 + $0x28] sm:$0xf]
      %v1931 = vld [vmem:[%s8 + $0x2c] sm:$0xf]
      %v1932 = vld [vmem:[%s8 + $0x30] sm:$0xf]
      %v1933 = vld [vmem:[%s8 + $0x34] sm:$0xf]
      %v1934 = vld [vmem:[%s8 + $0x38] sm:$0xf]
      %v1935 = vld [vmem:[%s8 + $0x3c] sm:$0xf]
      %v1936 = vpack.c.bf16 %v1890, %v1888
      %v1937 = vpack.c.bf16 %v1891, %v1889
      %v1938 = vpack.c.bf16 %v1894, %v1892
      %v1939 = vpack.c.bf16 %v1895, %v1893
      %v1940 = vpack.c.bf16 %v1898, %v1896
      %v1941 = vpack.c.bf16 %v1899, %v1897
      %v1942 = vpack.c.bf16 %v1902, %v1900
      %v1943 = vpack.c.bf16 %v1903, %v1901
      %v1944 = vpack.c.bf16 %v1906, %v1904
      %v1945 = vpack.c.bf16 %v1907, %v1905
      %v1946 = vpack.c.bf16 %v1910, %v1908
      %v1947 = vpack.c.bf16 %v1911, %v1909
      %v1948 = vpack.c.bf16 %v1914, %v1912
      %v1949 = vpack.c.bf16 %v1915, %v1913
      %v1950 = vpack.c.bf16 %v1918, %v1916
      %v1951 = vpack.c.bf16 %v1919, %v1917
      %v1952 = vld [vmem:[%s9] sm:$0xff]
      %v1953 = vld [vmem:[%s9 + $0x8] sm:$0xff]
      %v1954 = vld [vmem:[%s9 + $0x10] sm:$0xff]
      %v1955 = vld [vmem:[%s9 + $0x18] sm:$0xff]
      %v1956 = vld [vmem:[%s9 + $0x20] sm:$0xff]
      %v1957 = vld [vmem:[%s9 + $0x28] sm:$0xff]
      %v1958 = vld [vmem:[%s9 + $0x30] sm:$0xff]
      %v1959 = vld [vmem:[%s9 + $0x38] sm:$0xff]
      %v1960 = vld [vmem:[%s9 + $0x40] sm:$0xff]
      %v1961 = vld [vmem:[%s9 + $0x48] sm:$0xff]
      %v1962 = vld [vmem:[%s9 + $0x50] sm:$0xff]
      %v1963 = vld [vmem:[%s9 + $0x58] sm:$0xff]
      %v1964 = vld [vmem:[%s9 + $0x60] sm:$0xff]
      %v1965 = vld [vmem:[%s9 + $0x68] sm:$0xff]
      %v1966 = vld [vmem:[%s9 + $0x70] sm:$0xff]
      %v1967 = vld [vmem:[%s9 + $0x78] sm:$0xff]
      %1969 = vset.pattern.permute.xlu0 0
      %1970 = vperm.xlu0 %1969, %v1952
      %v1971 = vpop.permute.xlu0 %1970
      %1974 = vset.pattern.permute.xlu0 0
      %1975 = vperm.xlu0 %1974, %v1953
      %v1976 = vpop.permute.xlu0 %1975
      %1979 = vset.pattern.permute.xlu0 0
      %1980 = vperm.xlu0 %1979, %v1954
      %v1981 = vpop.permute.xlu0 %1980
      %1984 = vset.pattern.permute.xlu0 0
      %1985 = vperm.xlu0 %1984, %v1955
      %v1986 = vpop.permute.xlu0 %1985
      %1989 = vset.pattern.permute.xlu0 0
      %1990 = vperm.xlu0 %1989, %v1956
      %v1991 = vpop.permute.xlu0 %1990
      %1994 = vset.pattern.permute.xlu0 0
      %1995 = vperm.xlu0 %1994, %v1957
      %v1996 = vpop.permute.xlu0 %1995
      %1999 = vset.pattern.permute.xlu0 0
      %2000 = vperm.xlu0 %1999, %v1958
      %v2001 = vpop.permute.xlu0 %2000
      %2004 = vset.pattern.permute.xlu0 0
      %2005 = vperm.xlu0 %2004, %v1959
      %v2006 = vpop.permute.xlu0 %2005
      %2009 = vset.pattern.permute.xlu0 0
      %2010 = vperm.xlu0 %2009, %v1960
      %v2011 = vpop.permute.xlu0 %2010
      %2014 = vset.pattern.permute.xlu0 0
      %2015 = vperm.xlu0 %2014, %v1961
      %v2016 = vpop.permute.xlu0 %2015
      %2019 = vset.pattern.permute.xlu0 0
      %2020 = vperm.xlu0 %2019, %v1962
      %v2021 = vpop.permute.xlu0 %2020
      %2024 = vset.pattern.permute.xlu0 0
      %2025 = vperm.xlu0 %2024, %v1963
      %v2026 = vpop.permute.xlu0 %2025
      %2029 = vset.pattern.permute.xlu0 0
      %2030 = vperm.xlu0 %2029, %v1964
      %v2031 = vpop.permute.xlu0 %2030
      %2034 = vset.pattern.permute.xlu0 0
      %2035 = vperm.xlu0 %2034, %v1965
      %v2036 = vpop.permute.xlu0 %2035
      %2039 = vset.pattern.permute.xlu0 0
      %2040 = vperm.xlu0 %2039, %v1966
      %v2041 = vpop.permute.xlu0 %2040
      %2044 = vset.pattern.permute.xlu0 0
      %2045 = vperm.xlu0 %2044, %v1967
      %v2046 = vpop.permute.xlu0 %2045
      %v2064 = vunpack.c.l.b16 %v1920
      %v2065 = vunpack.c.l.b16 %v1921
      %v2066 = vunpack.c.l.b16 %v1922
      %v2067 = vunpack.c.l.b16 %v1923
      %v2068 = vunpack.c.l.b16 %v1924
      %v2069 = vunpack.c.l.b16 %v1925
      %v2070 = vunpack.c.l.b16 %v1926
      %v2071 = vunpack.c.l.b16 %v1927
      %v2072 = vunpack.c.l.b16 %v1928
      %v2073 = vunpack.c.l.b16 %v1929
      %v2074 = vunpack.c.l.b16 %v1930
      %v2075 = vunpack.c.l.b16 %v1931
      %v2076 = vunpack.c.l.b16 %v1932
      %v2077 = vunpack.c.l.b16 %v1933
      %v2078 = vunpack.c.l.b16 %v1934
      %v2079 = vunpack.c.l.b16 %v1935
      %v2080 = vpack.c.b16 %v2065, %v2064
      %v2081 = vpack.c.b16 %v2067, %v2066
      %v2082 = vpack.c.b16 %v2069, %v2068
      %v2083 = vpack.c.b16 %v2071, %v2070
      %v2084 = vpack.c.b16 %v2073, %v2072
      %v2085 = vpack.c.b16 %v2075, %v2074
      %v2086 = vpack.c.b16 %v2077, %v2076
      %v2087 = vpack.c.b16 %v2079, %v2078
      %2096 = vmatprep.subr.bf16.mxu0 %v1937
      %2097 = vmatpush1.bf16.msra.mxu0 %v1936
      %2098 = vmatprep.subr.bf16.mxu0 %v1939
      %2099 = vmatpush1.bf16.msra.mxu0 %v1938
      %2100 = vmatprep.subr.bf16.mxu0 %v1941
      %2101 = vmatpush1.bf16.msra.mxu0 %v1940
      %2102 = vmatprep.subr.bf16.mxu0 %v1943
      %2103 = vmatpush1.bf16.msra.mxu0 %v1942
      %2104 = vmatprep.subr.bf16.mxu0 %v1945
      %2105 = vmatpush1.bf16.msra.mxu0 %v1944
      %2106 = vmatprep.subr.bf16.mxu0 %v1947
      %2107 = vmatpush1.bf16.msra.mxu0 %v1946
      %2108 = vmatprep.subr.bf16.mxu0 %v1949
      %2109 = vmatpush1.bf16.msra.mxu0 %v1948
      %2110 = vmatprep.subr.bf16.mxu0 %v1951
      %2111 = vmatpush1.bf16.msra.mxu0 %v1950
      %2112 = vmatprep.subr.bf16.mxu0 0
      %2113 = vmatpush1.bf16.msra.mxu0 0
      %2114 = vmatprep.subr.bf16.mxu0 0
      %2115 = vmatpush1.bf16.msra.mxu0 0
      %2116 = vmatprep.subr.bf16.mxu0 0
      %2117 = vmatpush1.bf16.msra.mxu0 0
      %2118 = vmatprep.subr.bf16.mxu0 0
      %2119 = vmatpush1.bf16.msra.mxu0 0
      %2120 = vmatprep.subr.bf16.mxu0 0
      %2121 = vmatpush1.bf16.msra.mxu0 0
      %2122 = vmatprep.subr.bf16.mxu0 0
      %2123 = vmatpush1.bf16.msra.mxu0 0
      %2124 = vmatprep.subr.bf16.mxu0 0
      %2125 = vmatpush1.bf16.msra.mxu0 0
      %2126 = vmatprep.subr.bf16.mxu0 0
      %2127 = vmatpush1.bf16.msra.mxu0 0
      %2128 = vmatprep.mubr.bf16.mxu0 0
      %2129 = vmatmul.mubr.bf16.gmra.mrb[0].mxu0 %v2080
      %v2130 = vpop.f32.mrb[0].mxu0
      %v2131 = vadd.f32 %v1971, %v2130
      %v2132 = vpop.f32.mrb[0].mxu0
      %v2133 = vadd.f32 %v1971, %v2132
      %v2134 = vpop.f32.mrb[0].mxu0
      %v2135 = vadd.f32 %v1976, %v2134
      %v2136 = vpop.f32.mrb[0].mxu0
      %v2137 = vadd.f32 %v1976, %v2136
      %2138 = vmatprep.mubr.bf16.mxu0 0
      %2139 = vmatmul.mubr.bf16.gmra.mrb[0].mxu0 %v2081
      %v2140 = vpop.f32.mrb[0].mxu0
      %v2141 = vadd.f32 %v1981, %v2140
      %v2142 = vpop.f32.mrb[0].mxu0
      %v2143 = vadd.f32 %v1981, %v2142
      %v2144 = vpop.f32.mrb[0].mxu0
      %v2145 = vadd.f32 %v1986, %v2144
      %v2146 = vpop.f32.mrb[0].mxu0
      %v2147 = vadd.f32 %v1986, %v2146
      %2148 = vmatprep.mubr.bf16.mxu0 0
      %2149 = vmatmul.mubr.bf16.gmra.mrb[0].mxu0 %v2082
      %v2150 = vpop.f32.mrb[0].mxu0
      %v2151 = vadd.f32 %v1991, %v2150
      %v2152 = vpop.f32.mrb[0].mxu0
      %v2153 = vadd.f32 %v1991, %v2152
      %v2154 = vpop.f32.mrb[0].mxu0
      %v2155 = vadd.f32 %v1996, %v2154
      %v2156 = vpop.f32.mrb[0].mxu0
      %v2157 = vadd.f32 %v1996, %v2156
      %2158 = vmatprep.mubr.bf16.mxu0 0
      %2159 = vmatmul.mubr.bf16.gmra.mrb[0].mxu0 %v2083
      %v2160 = vpop.f32.mrb[0].mxu0
      %v2161 = vadd.f32 %v2001, %v2160
      %v2162 = vpop.f32.mrb[0].mxu0
      %v2163 = vadd.f32 %v2001, %v2162
      %v2164 = vpop.f32.mrb[0].mxu0
      %v2165 = vadd.f32 %v2006, %v2164
      %v2166 = vpop.f32.mrb[0].mxu0
      %v2167 = vadd.f32 %v2006, %v2166
      %2168 = vmatprep.mubr.bf16.mxu0 0
      %2169 = vmatmul.mubr.bf16.gmra.mrb[0].mxu0 %v2084
      %v2170 = vpop.f32.mrb[0].mxu0
      %v2171 = vadd.f32 %v2011, %v2170
      %v2172 = vpop.f32.mrb[0].mxu0
      %v2173 = vadd.f32 %v2011, %v2172
      %v2174 = vpop.f32.mrb[0].mxu0
      %v2175 = vadd.f32 %v2016, %v2174
      %v2176 = vpop.f32.mrb[0].mxu0
      %v2177 = vadd.f32 %v2016, %v2176
      %2178 = vmatprep.mubr.bf16.mxu0 0
      %2179 = vmatmul.mubr.bf16.gmra.mrb[0].mxu0 %v2085
      %v2180 = vpop.f32.mrb[0].mxu0
      %v2181 = vadd.f32 %v2021, %v2180
      %v2182 = vpop.f32.mrb[0].mxu0
      %v2183 = vadd.f32 %v2021, %v2182
      %v2184 = vpop.f32.mrb[0].mxu0
      %v2185 = vadd.f32 %v2026, %v2184
      %v2186 = vpop.f32.mrb[0].mxu0
      %v2187 = vadd.f32 %v2026, %v2186
      %2188 = vmatprep.mubr.bf16.mxu0 0
      %2189 = vmatmul.mubr.bf16.gmra.mrb[0].mxu0 %v2086
      %v2190 = vpop.f32.mrb[0].mxu0
      %v2191 = vadd.f32 %v2031, %v2190
      %v2192 = vpop.f32.mrb[0].mxu0
      %v2193 = vadd.f32 %v2031, %v2192
      %v2194 = vpop.f32.mrb[0].mxu0
      %v2195 = vadd.f32 %v2036, %v2194
      %v2196 = vpop.f32.mrb[0].mxu0
      %v2197 = vadd.f32 %v2036, %v2196
      %2198 = vmatprep.mubr.bf16.mxu0 0
      %2199 = vmatmul.mubr.bf16.gmra.mrb[0].mxu0 %v2087
      %v2200 = vpop.f32.mrb[0].mxu0
      %v2201 = vadd.f32 %v2041, %v2200
      %v2202 = vpop.f32.mrb[0].mxu0
      %v2203 = vadd.f32 %v2041, %v2202
      %v2204 = vpop.f32.mrb[0].mxu0
      %v2205 = vadd.f32 %v2046, %v2204
      %v2206 = vpop.f32.mrb[0].mxu0
      %v2207 = vadd.f32 %v2046, %v2206
      %2208 = vdwg.mxu0
      %v2209 = vmax.f32 %v2131, 0.0
      %v2210 = vmax.f32 %v2133, 0.0
      %v2211 = vmax.f32 %v2135, 0.0
      %v2212 = vmax.f32 %v2137, 0.0
      %v2213 = vmax.f32 %v2141, 0.0
      %v2214 = vmax.f32 %v2143, 0.0
      %v2215 = vmax.f32 %v2145, 0.0
      %v2216 = vmax.f32 %v2147, 0.0
      %v2217 = vmax.f32 %v2151, 0.0
      %v2218 = vmax.f32 %v2153, 0.0
      %v2219 = vmax.f32 %v2155, 0.0
      %v2220 = vmax.f32 %v2157, 0.0
      %v2221 = vmax.f32 %v2161, 0.0
      %v2222 = vmax.f32 %v2163, 0.0
      %v2223 = vmax.f32 %v2165, 0.0
      %v2224 = vmax.f32 %v2167, 0.0
      %v2225 = vmax.f32 %v2171, 0.0
      %v2226 = vmax.f32 %v2173, 0.0
      %v2227 = vmax.f32 %v2175, 0.0
      %v2228 = vmax.f32 %v2177, 0.0
      %v2229 = vmax.f32 %v2181, 0.0
      %v2230 = vmax.f32 %v2183, 0.0
      %v2231 = vmax.f32 %v2185, 0.0
      %v2232 = vmax.f32 %v2187, 0.0
      %v2233 = vmax.f32 %v2191, 0.0
      %v2234 = vmax.f32 %v2193, 0.0
      %v2235 = vmax.f32 %v2195, 0.0
      %v2236 = vmax.f32 %v2197, 0.0
      %v2237 = vmax.f32 %v2201, 0.0
      %v2238 = vmax.f32 %v2203, 0.0
      %v2239 = vmax.f32 %v2205, 0.0
      %v2240 = vmax.f32 %v2207, 0.0
      %v2241 = vld [vmem:[%s10] sm:$0xf]
      %v2242 = vld [vmem:[%s10 + $0x4] sm:$0xf]
      %v2243 = vld [vmem:[%s10 + $0x8] sm:$0xf]
      %v2244 = vld [vmem:[%s10 + $0xc] sm:$0xf]
      %v2245 = vld [vmem:[%s10 + $0x10] sm:$0xf]
      %v2246 = vld [vmem:[%s10 + $0x14] sm:$0xf]
      %v2247 = vld [vmem:[%s10 + $0x18] sm:$0xf]
      %v2248 = vld [vmem:[%s10 + $0x1c] sm:$0xf]
      %v2249 = vld [vmem:[%s10 + $0x20] sm:$0xf]
      %v2250 = vld [vmem:[%s10 + $0x24] sm:$0xf]
      %v2251 = vld [vmem:[%s10 + $0x28] sm:$0xf]
      %v2252 = vld [vmem:[%s10 + $0x2c] sm:$0xf]
      %v2253 = vld [vmem:[%s10 + $0x30] sm:$0xf]
      %v2254 = vld [vmem:[%s10 + $0x34] sm:$0xf]
      %v2255 = vld [vmem:[%s10 + $0x38] sm:$0xf]
      %v2256 = vld [vmem:[%s10 + $0x3c] sm:$0xf]
      %v2257 = vpack.c.bf16 %v2211, %v2209
      %v2258 = vpack.c.bf16 %v2212, %v2210
      %v2259 = vpack.c.bf16 %v2215, %v2213
      %v2260 = vpack.c.bf16 %v2216, %v2214
      %v2261 = vpack.c.bf16 %v2219, %v2217
      %v2262 = vpack.c.bf16 %v2220, %v2218
      %v2263 = vpack.c.bf16 %v2223, %v2221
      %v2264 = vpack.c.bf16 %v2224, %v2222
      %v2265 = vpack.c.bf16 %v2227, %v2225
      %v2266 = vpack.c.bf16 %v2228, %v2226
      %v2267 = vpack.c.bf16 %v2231, %v2229
      %v2268 = vpack.c.bf16 %v2232, %v2230
      %v2269 = vpack.c.bf16 %v2235, %v2233
      %v2270 = vpack.c.bf16 %v2236, %v2234
      %v2271 = vpack.c.bf16 %v2239, %v2237
      %v2272 = vpack.c.bf16 %v2240, %v2238
      %v2273 = vld [vmem:[%s11] sm:$0xff]
      %v2274 = vld [vmem:[%s11 + $0x8] sm:$0xff]
      %v2275 = vld [vmem:[%s11 + $0x10] sm:$0xff]
      %v2276 = vld [vmem:[%s11 + $0x18] sm:$0xff]
      %v2277 = vld [vmem:[%s11 + $0x20] sm:$0xff]
      %v2278 = vld [vmem:[%s11 + $0x28] sm:$0xff]
      %v2279 = vld [vmem:[%s11 + $0x30] sm:$0xff]
      %v2280 = vld [vmem:[%s11 + $0x38] sm:$0xff]
      %v2281 = vld [vmem:[%s11 + $0x40] sm:$0xff]
      %v2282 = vld [vmem:[%s11 + $0x48] sm:$0xff]
      %v2283 = vld [vmem:[%s11 + $0x50] sm:$0xff]
      %v2284 = vld [vmem:[%s11 + $0x58] sm:$0xff]
      %v2285 = vld [vmem:[%s11 + $0x60] sm:$0xff]
      %v2286 = vld [vmem:[%s11 + $0x68] sm:$0xff]
      %v2287 = vld [vmem:[%s11 + $0x70] sm:$0xff]
      %v2288 = vld [vmem:[%s11 + $0x78] sm:$0xff]
      %2290 = vset.pattern.permute.xlu0 0
      %2291 = vperm.xlu0 %2290, %v2273
      %v2292 = vpop.permute.xlu0 %2291
      %2295 = vset.pattern.permute.xlu0 0
      %2296 = vperm.xlu0 %2295, %v2274
      %v2297 = vpop.permute.xlu0 %2296
      %2300 = vset.pattern.permute.xlu0 0
      %2301 = vperm.xlu0 %2300, %v2275
      %v2302 = vpop.permute.xlu0 %2301
      %2305 = vset.pattern.permute.xlu0 0
      %2306 = vperm.xlu0 %2305, %v2276
      %v2307 = vpop.permute.xlu0 %2306
      %2310 = vset.pattern.permute.xlu0 0
      %2311 = vperm.xlu0 %2310, %v2277
      %v2312 = vpop.permute.xlu0 %2311
      %2315 = vset.pattern.permute.xlu0 0
      %2316 = vperm.xlu0 %2315, %v2278
      %v2317 = vpop.permute.xlu0 %2316
      %2320 = vset.pattern.permute.xlu0 0
      %2321 = vperm.xlu0 %2320, %v2279
      %v2322 = vpop.permute.xlu0 %2321
      %2325 = vset.pattern.permute.xlu0 0
      %2326 = vperm.xlu0 %2325, %v2280
      %v2327 = vpop.permute.xlu0 %2326
      %2330 = vset.pattern.permute.xlu0 0
      %2331 = vperm.xlu0 %2330, %v2281
      %v2332 = vpop.permute.xlu0 %2331
      %2335 = vset.pattern.permute.xlu0 0
      %2336 = vperm.xlu0 %2335, %v2282
      %v2337 = vpop.permute.xlu0 %2336
      %2340 = vset.pattern.permute.xlu0 0
      %2341 = vperm.xlu0 %2340, %v2283
      %v2342 = vpop.permute.xlu0 %2341
      %2345 = vset.pattern.permute.xlu0 0
      %2346 = vperm.xlu0 %2345, %v2284
      %v2347 = vpop.permute.xlu0 %2346
      %2350 = vset.pattern.permute.xlu0 0
      %2351 = vperm.xlu0 %2350, %v2285
      %v2352 = vpop.permute.xlu0 %2351
      %2355 = vset.pattern.permute.xlu0 0
      %2356 = vperm.xlu0 %2355, %v2286
      %v2357 = vpop.permute.xlu0 %2356
      %2360 = vset.pattern.permute.xlu0 0
      %2361 = vperm.xlu0 %2360, %v2287
      %v2362 = vpop.permute.xlu0 %2361
      %2365 = vset.pattern.permute.xlu0 0
      %2366 = vperm.xlu0 %2365, %v2288
      %v2367 = vpop.permute.xlu0 %2366
      %v2385 = vunpack.c.l.b16 %v2241
      %v2386 = vunpack.c.l.b16 %v2242
      %v2387 = vunpack.c.l.b16 %v2243
      %v2388 = vunpack.c.l.b16 %v2244
      %v2389 = vunpack.c.l.b16 %v2245
      %v2390 = vunpack.c.l.b16 %v2246
      %v2391 = vunpack.c.l.b16 %v2247
      %v2392 = vunpack.c.l.b16 %v2248
      %v2393 = vunpack.c.l.b16 %v2249
      %v2394 = vunpack.c.l.b16 %v2250
      %v2395 = vunpack.c.l.b16 %v2251
      %v2396 = vunpack.c.l.b16 %v2252
      %v2397 = vunpack.c.l.b16 %v2253
      %v2398 = vunpack.c.l.b16 %v2254
      %v2399 = vunpack.c.l.b16 %v2255
      %v2400 = vunpack.c.l.b16 %v2256
      %v2401 = vpack.c.b16 %v2386, %v2385
      %v2402 = vpack.c.b16 %v2388, %v2387
      %v2403 = vpack.c.b16 %v2390, %v2389
      %v2404 = vpack.c.b16 %v2392, %v2391
      %v2405 = vpack.c.b16 %v2394, %v2393
      %v2406 = vpack.c.b16 %v2396, %v2395
      %v2407 = vpack.c.b16 %v2398, %v2397
      %v2408 = vpack.c.b16 %v2400, %v2399
      %2417 = vmatprep.subr.bf16.mxu0 %v2258
      %2418 = vmatpush1.bf16.msra.mxu0 %v2257
      %2419 = vmatprep.subr.bf16.mxu0 %v2260
      %2420 = vmatpush1.bf16.msra.mxu0 %v2259
      %2421 = vmatprep.subr.bf16.mxu0 %v2262
      %2422 = vmatpush1.bf16.msra.mxu0 %v2261
      %2423 = vmatprep.subr.bf16.mxu0 %v2264
      %2424 = vmatpush1.bf16.msra.mxu0 %v2263
      %2425 = vmatprep.subr.bf16.mxu0 %v2266
      %2426 = vmatpush1.bf16.msra.mxu0 %v2265
      %2427 = vmatprep.subr.bf16.mxu0 %v2268
      %2428 = vmatpush1.bf16.msra.mxu0 %v2267
      %2429 = vmatprep.subr.bf16.mxu0 %v2270
      %2430 = vmatpush1.bf16.msra.mxu0 %v2269
      %2431 = vmatprep.subr.bf16.mxu0 %v2272
      %2432 = vmatpush1.bf16.msra.mxu0 %v2271
      %2433 = vmatprep.subr.bf16.mxu0 0
      %2434 = vmatpush1.bf16.msra.mxu0 0
      %2435 = vmatprep.subr.bf16.mxu0 0
      %2436 = vmatpush1.bf16.msra.mxu0 0
      %2437 = vmatprep.subr.bf16.mxu0 0
      %2438 = vmatpush1.bf16.msra.mxu0 0
      %2439 = vmatprep.subr.bf16.mxu0 0
      %2440 = vmatpush1.bf16.msra.mxu0 0
      %2441 = vmatprep.subr.bf16.mxu0 0
      %2442 = vmatpush1.bf16.msra.mxu0 0
      %2443 = vmatprep.subr.bf16.mxu0 0
      %2444 = vmatpush1.bf16.msra.mxu0 0
      %2445 = vmatprep.subr.bf16.mxu0 0
      %2446 = vmatpush1.bf16.msra.mxu0 0
      %2447 = vmatprep.subr.bf16.mxu0 0
      %2448 = vmatpush1.bf16.msra.mxu0 0
      %2449 = vmatprep.mubr.bf16.mxu0 0
      %2450 = vmatmul.mubr.bf16.gmra.mrb[0].mxu0 %v2401
      %v2451 = vpop.f32.mrb[0].mxu0
      %v2452 = vadd.f32 %v2292, %v2451
      %v2453 = vpop.f32.mrb[0].mxu0
      %v2454 = vadd.f32 %v2292, %v2453
      %v2455 = vpop.f32.mrb[0].mxu0
      %v2456 = vadd.f32 %v2297, %v2455
      %v2457 = vpop.f32.mrb[0].mxu0
      %v2458 = vadd.f32 %v2297, %v2457
      %2459 = vmatprep.mubr.bf16.mxu0 0
      %2460 = vmatmul.mubr.bf16.gmra.mrb[0].mxu0 %v2402
      %v2461 = vpop.f32.mrb[0].mxu0
      %v2462 = vadd.f32 %v2302, %v2461
      %v2463 = vpop.f32.mrb[0].mxu0
      %v2464 = vadd.f32 %v2302, %v2463
      %v2465 = vpop.f32.mrb[0].mxu0
      %v2466 = vadd.f32 %v2307, %v2465
      %v2467 = vpop.f32.mrb[0].mxu0
      %v2468 = vadd.f32 %v2307, %v2467
      %2469 = vmatprep.mubr.bf16.mxu0 0
      %2470 = vmatmul.mubr.bf16.gmra.mrb[0].mxu0 %v2403
      %v2471 = vpop.f32.mrb[0].mxu0
      %v2472 = vadd.f32 %v2312, %v2471
      %v2473 = vpop.f32.mrb[0].mxu0
      %v2474 = vadd.f32 %v2312, %v2473
      %v2475 = vpop.f32.mrb[0].mxu0
      %v2476 = vadd.f32 %v2317, %v2475
      %v2477 = vpop.f32.mrb[0].mxu0
      %v2478 = vadd.f32 %v2317, %v2477
      %2479 = vmatprep.mubr.bf16.mxu0 0
      %2480 = vmatmul.mubr.bf16.gmra.mrb[0].mxu0 %v2404
      %v2481 = vpop.f32.mrb[0].mxu0
      %v2482 = vadd.f32 %v2322, %v2481
      %v2483 = vpop.f32.mrb[0].mxu0
      %v2484 = vadd.f32 %v2322, %v2483
      %v2485 = vpop.f32.mrb[0].mxu0
      %v2486 = vadd.f32 %v2327, %v2485
      %v2487 = vpop.f32.mrb[0].mxu0
      %v2488 = vadd.f32 %v2327, %v2487
      %2489 = vmatprep.mubr.bf16.mxu0 0
      %2490 = vmatmul.mubr.bf16.gmra.mrb[0].mxu0 %v2405
      %v2491 = vpop.f32.mrb[0].mxu0
      %v2492 = vadd.f32 %v2332, %v2491
      %v2493 = vpop.f32.mrb[0].mxu0
      %v2494 = vadd.f32 %v2332, %v2493
      %v2495 = vpop.f32.mrb[0].mxu0
      %v2496 = vadd.f32 %v2337, %v2495
      %v2497 = vpop.f32.mrb[0].mxu0
      %v2498 = vadd.f32 %v2337, %v2497
      %2499 = vmatprep.mubr.bf16.mxu0 0
      %2500 = vmatmul.mubr.bf16.gmra.mrb[0].mxu0 %v2406
      %v2501 = vpop.f32.mrb[0].mxu0
      %v2502 = vadd.f32 %v2342, %v2501
      %v2503 = vpop.f32.mrb[0].mxu0
      %v2504 = vadd.f32 %v2342, %v2503
      %v2505 = vpop.f32.mrb[0].mxu0
      %v2506 = vadd.f32 %v2347, %v2505
      %v2507 = vpop.f32.mrb[0].mxu0
      %v2508 = vadd.f32 %v2347, %v2507
      %2509 = vmatprep.mubr.bf16.mxu0 0
      %2510 = vmatmul.mubr.bf16.gmra.mrb[0].mxu0 %v2407
      %v2511 = vpop.f32.mrb[0].mxu0
      %v2512 = vadd.f32 %v2352, %v2511
      %v2513 = vpop.f32.mrb[0].mxu0
      %v2514 = vadd.f32 %v2352, %v2513
      %v2515 = vpop.f32.mrb[0].mxu0
      %v2516 = vadd.f32 %v2357, %v2515
      %v2517 = vpop.f32.mrb[0].mxu0
      %v2518 = vadd.f32 %v2357, %v2517
      %2519 = vmatprep.mubr.bf16.mxu0 0
      %2520 = vmatmul.mubr.bf16.gmra.mrb[0].mxu0 %v2408
      %v2521 = vpop.f32.mrb[0].mxu0
      %v2522 = vadd.f32 %v2362, %v2521
      %v2523 = vpop.f32.mrb[0].mxu0
      %v2524 = vadd.f32 %v2362, %v2523
      %v2525 = vpop.f32.mrb[0].mxu0
      %v2526 = vadd.f32 %v2367, %v2525
      %v2527 = vpop.f32.mrb[0].mxu0
      %v2528 = vadd.f32 %v2367, %v2527
      %2529 = vdwg.mxu0
      %v2530 = vadd.f32 %v1888, %v2452
      %v2531 = vadd.f32 %v1889, %v2454
      %v2532 = vadd.f32 %v1890, %v2456
      %v2533 = vadd.f32 %v1891, %v2458
      %v2534 = vadd.f32 %v1892, %v2462
      %v2535 = vadd.f32 %v1893, %v2464
      %v2536 = vadd.f32 %v1894, %v2466
      %v2537 = vadd.f32 %v1895, %v2468
      %v2538 = vadd.f32 %v1896, %v2472
      %v2539 = vadd.f32 %v1897, %v2474
      %v2540 = vadd.f32 %v1898, %v2476
      %v2541 = vadd.f32 %v1899, %v2478
      %v2542 = vadd.f32 %v1900, %v2482
      %v2543 = vadd.f32 %v1901, %v2484
      %v2544 = vadd.f32 %v1902, %v2486
      %v2545 = vadd.f32 %v1903, %v2488
      %v2546 = vadd.f32 %v1904, %v2492
      %v2547 = vadd.f32 %v1905, %v2494
      %v2548 = vadd.f32 %v1906, %v2496
      %v2549 = vadd.f32 %v1907, %v2498
      %v2550 = vadd.f32 %v1908, %v2502
      %v2551 = vadd.f32 %v1909, %v2504
      %v2552 = vadd.f32 %v1910, %v2506
      %v2553 = vadd.f32 %v1911, %v2508
      %v2554 = vadd.f32 %v1912, %v2512
      %v2555 = vadd.f32 %v1913, %v2514
      %v2556 = vadd.f32 %v1914, %v2516
      %v2557 = vadd.f32 %v1915, %v2518
      %v2558 = vadd.f32 %v1916, %v2522
      %v2559 = vadd.f32 %v1917, %v2524
      %v2560 = vadd.f32 %v1918, %v2526
      %v2561 = vadd.f32 %v1919, %v2528
      %2562 = vst [vmem:[%s471] sm:$0xff] %v2530
      %2563 = vst [vmem:[%s471 + $0x8] sm:$0xff] %v2531
      %2564 = vst [vmem:[%s471 + $0x10] sm:$0xff] %v2532
      %2565 = vst [vmem:[%s471 + $0x18] sm:$0xff] %v2533
      %2566 = vst [vmem:[%s471 + $0x20] sm:$0xff] %v2534
      %2567 = vst [vmem:[%s471 + $0x28] sm:$0xff] %v2535
      %2568 = vst [vmem:[%s471 + $0x30] sm:$0xff] %v2536
      %2569 = vst [vmem:[%s471 + $0x38] sm:$0xff] %v2537
      %2570 = vst [vmem:[%s471 + $0x40] sm:$0xff] %v2538
      %2571 = vst [vmem:[%s471 + $0x48] sm:$0xff] %v2539
      %2572 = vst [vmem:[%s471 + $0x50] sm:$0xff] %v2540
      %2573 = vst [vmem:[%s471 + $0x58] sm:$0xff] %v2541
      %2574 = vst [vmem:[%s471 + $0x60] sm:$0xff] %v2542
      %2575 = vst [vmem:[%s471 + $0x68] sm:$0xff] %v2543
      %2576 = vst [vmem:[%s471 + $0x70] sm:$0xff] %v2544
      %2577 = vst [vmem:[%s471 + $0x78] sm:$0xff] %v2545
      %2578 = vst [vmem:[%s471 + $0x80] sm:$0xff] %v2546
      %2579 = vst [vmem:[%s471 + $0x88] sm:$0xff] %v2547
      %2580 = vst [vmem:[%s471 + $0x90] sm:$0xff] %v2548
      %2581 = vst [vmem:[%s471 + $0x98] sm:$0xff] %v2549
      %2582 = vst [vmem:[%s471 + $0xa0] sm:$0xff] %v2550
      %2583 = vst [vmem:[%s471 + $0xa8] sm:$0xff] %v2551
      %2584 = vst [vmem:[%s471 + $0xb0] sm:$0xff] %v2552
      %2585 = vst [vmem:[%s471 + $0xb8] sm:$0xff] %v2553
      %2586 = vst [vmem:[%s471 + $0xc0] sm:$0xff] %v2554
      %2587 = vst [vmem:[%s471 + $0xc8] sm:$0xff] %v2555
      %2588 = vst [vmem:[%s471 + $0xd0] sm:$0xff] %v2556
      %2589 = vst [vmem:[%s471 + $0xd8] sm:$0xff] %v2557
      %2590 = vst [vmem:[%s471 + $0xe0] sm:$0xff] %v2558
      %2591 = vst [vmem:[%s471 + $0xe8] sm:$0xff] %v2559
      %2592 = vst [vmem:[%s471 + $0xf0] sm:$0xff] %v2560
      %2593 = vst [vmem:[%s471 + $0xf8] sm:$0xff] %v2561
      %s2594 = smul.u32 2, %s28
      %p2595 = scmp.lt.s32.totalorder %s27, 1
      %s2596 = scalar_select %p2595, %s27, 1
      %p2597 = scmp.lt.s32.totalorder %s2594, 1
      %s2598 = scalar_select %p2597, %s2594, 1
      %s2599 = smul.addr %s2596, 32
      %s2600 = sadd.s32 %s2598, %s2599
      %s2601 = smul.addr %s2600, 8
      %s2602 = scalar_lea.vmem %s12, %s2601
      // Predicated region
      $region73: #{cross_attention_block.1} parent=67 // pred_check
        %p2603 = pneg %p319
      $region74: #{cross_attention_block.1} parent=67 // pred_check_branch
        %2605 = sbr.rel (%p2603) target = $region76
      $region75: #{cross_attention_block.1} parent=67 // pred_region
        %s2606 = smul.u32 2, %s28
      $region76: #{cross_attention_block.1} parent=67 // pred_fallthru
        _
    $region68: #{cross_attention_block.1} parent=5 // pred_fallthru
      _
    %p2607 = scmp.le.s32.totalorder 2, %s18
    // Predicated region
    $region77: #{cross_attention_block.1} parent=5 // pred_check
      %p2608 = pneg %p2607
    $region78: #{cross_attention_block.1} parent=5 // pred_check_branch
      %2610 = sbr.rel (%p2608) target = $region80
    $region79: #{cross_attention_block.1} parent=5 // pred_region
      %s2611 = ssub.s32 %s18, 2
      // Predicated region
      $region81: #{cross_attention_block.1} parent=79 // pred_check
        %p2612 = pneg %p325
      $region82: #{cross_attention_block.1} parent=79 // pred_check_branch
        %2614 = sbr.rel (%p2612) target = $region84
      $region83: #{cross_attention_block.1} parent=79 // pred_region
        %s2615 = smul.u32 2, %s30
        %p2616 = scmp.lt.s32.totalorder %s29, 1
        %s2617 = scalar_select %p2616, %s29, 1
        %p2618 = scmp.lt.s32.totalorder %s2615, 1
        %s2619 = scalar_select %p2618, %s2615, 1
        %s2620 = smul.addr %s2617, 32
        %s2621 = sadd.s32 %s2619, %s2620
        %s2622 = smul.addr %s2621, 8
        %s2623 = scalar_lea.vmem %s12, %s2622
      $region84: #{cross_attention_block.1} parent=79 // pred_fallthru
        _
    $region80: #{cross_attention_block.1} parent=5 // pred_fallthru
      _
  $region6: #{cross_attention_block.1} parent=0 // loop_footer
    %s22 = sadd.s32 1, %s18
  $region7: #{cross_attention_block.1} parent=0 // loop_footer_branch
    %17 = sbr.rel target = $region3
  $region8: #{cross_attention_block.1} parent=0 // loop_exit
    _

</llo_original>
